<compile_context>
chip_gen: v7x
topology: tpu7x:2x2x1
jax: 0.10.0
libtpu: 0.0.40
codegen_flags: <defaults>
</compile_context>

<pallas_src>
import jax
import jax.numpy as jnp
from jax.experimental import pallas as pl
from jax.experimental.pallas import tpu as pltpu


# ---------------------------------------------------------------------------
# Fused kernel: input projection + merged bidirectional recurrence + linear head
# ---------------------------------------------------------------------------
def make_fused_bilstm_kernel(T, B, H):
    """One grid step computes the whole sequence. Time-major rows: row = t*B + b."""
    H2 = 2 * H

    def kernel(x_ref,      # [T*B, 2I]  row block s = [x(s) | x(T-1-s)]
               wi_ref,     # [2I, 8H]   block-diag input weights, gate-interleaved columns
               b_ref,      # [1, 8H]    combined biases (b_ih + b_hh), same column order
               wh_ref,     # [2H, 8H]   block-diag(Wh_f, Wh_b), same column order
               wl_ref,     # [2H, O]    fused linear head weight ([wl_f; wl_b])
               bl_ref,     # [1, O]
               o_ref,      # [T*B, O]   output (time-major)
               h_all):     # VMEM scratch [T*B, 2H]: row t*B+b = [h_f(t) | h_b(t)]
        # --- hoisted input projection: ONE MXU matmul for the whole sequence, both dirs ---
        gin = (jnp.dot(x_ref[...], wi_ref[...], preferred_element_type=jnp.float32)
               + b_ref[...])                                            # [T*B, 8H]

        # Per-step gate-input rows. These are static slices of a loop-invariant value and do
        # not depend on (h, c), so they are scheduled off the serial recurrent critical path.
        g_steps = [gin[s * B:(s + 1) * B, :] for s in range(T)]

        wh = wh_ref[...]
        h = jnp.zeros((B, H2), jnp.float32)      # [h_f(s) | h_b(T-1-s)]
        c = jnp.zeros((B, H2), jnp.float32)      # [c_f    | c_b       ]

        # Static unroll over T (small, fixed): per step ONE MXU push + ONE full-width tanh.
        for s in range(T):
            gates = g_steps[s] + jnp.dot(h, wh, preferred_element_type=jnp.float32)  # [B, 8H]
            th = jnp.tanh(gates)          # single full-width (256-lane) EUP pass
            sg = th * 0.5 + 0.5           # sigmoid(z) for the pre-halved i/f/o columns
            # gate blocks (each [B, 2H] = [fwd | bwd], matching c / h layout):
            i_g = sg[:, 0 * H2:1 * H2]
            f_g = sg[:, 1 * H2:2 * H2]
            g_g = th[:, 2 * H2:3 * H2]
            o_g = sg[:, 3 * H2:4 * H2]
            c = f_g * c + i_g * g_g
            h = o_g * jnp.tanh(c)
            # writeback (off critical path): fwd half -> time s, bwd half -> time T-1-s
            rf = s * B
            rb = (T - 1 - s) * B
            h_all[rf:rf + B, 0:H] = h[:, 0:H]
            h_all[rb:rb + B, H:H2] = h[:, H:H2]

        # --- fused linear head: ONE [T*B, 2H] @ [2H, O] matmul + bias ---
        o_ref[...] = (jnp.dot(h_all[...], wl_ref[...], preferred_element_type=jnp.float32)
                      + bl_ref[...])

    return kernel


# ---------------------------------------------------------------------------
# Wrapper (accepts / returns the PyTorch batch_first layout)
# ---------------------------------------------------------------------------
def _interleave_gate_cols(wf, wb, H):
    """[., 4H],[., 4H] -> [., 8H] columns ordered [i_f i_b | f_f f_b | g_f g_b | o_f o_b]."""
    parts = []
    for k in range(4):
        parts.append(wf[:, k * H:(k + 1) * H])
        parts.append(wb[:, k * H:(k + 1) * H])
    return jnp.concatenate(parts, axis=1)


@jax.jit
def bidirectional_lstm(x, params):
    """x: [B, T, input_size] (batch_first, like the PyTorch module). Returns [B, T, output_size]."""
    B, T, I = x.shape
    H = params["wh_f"].shape[0]
    O = params["b_lin"].shape[-1]
    H2 = 2 * H
    f32 = jnp.float32

    # sigmoid-via-tanh trick: pre-scale the i / f / o gate columns by 0.5 (g columns keep 1.0)
    gate_scale = jnp.concatenate([jnp.full((H,), 0.5, f32), jnp.full((H,), 0.5, f32),
                                  jnp.ones((H,), f32), jnp.full((H,), 0.5, f32)])
    wi_f = params["wi_f"] * gate_scale[None, :]
    wi_b = params["wi_b"] * gate_scale[None, :]
    wh_f = params["wh_f"] * gate_scale[None, :]
    wh_b = params["wh_b"] * gate_scale[None, :]
    b_f = params["b_f"] * gate_scale[None, :]
    b_b = params["b_b"] * gate_scale[None, :]

    zi = jnp.zeros_like(wi_f)
    zh = jnp.zeros_like(wh_f)
    # input weights: rows 0:I act on x(t) (forward), rows I:2I act on x(T-1-t) (backward)
    wi_big = jnp.concatenate([_interleave_gate_cols(wi_f, zi, H),
                              _interleave_gate_cols(zi, wi_b, H)], axis=0)   # [2I, 8H]
    # recurrent weights: block-diag(Wh_f, Wh_b) in the same interleaved column order
    wh_big = jnp.concatenate([_interleave_gate_cols(wh_f, zh, H),
                              _interleave_gate_cols(zh, wh_b, H)], axis=0)   # [2H, 8H]
    b_big = _interleave_gate_cols(b_f, b_b, H)                               # [1, 8H]
    wl = jnp.concatenate([params["wl_f"], params["wl_b"]], axis=0)           # [2H, O]

    # time-major x with the time-reversed copy along lanes: row block s = [x(s) | x(T-1-s)]
    x_tm = jnp.transpose(x, (1, 0, 2))                                       # [T, B, I]
    x_pair = jnp.concatenate([x_tm, x_tm[::-1]], axis=-1).reshape(T * B, 2 * I)

    def full(shape):
        return pl.BlockSpec(shape, lambda i, _n=len(shape): (0,) * _n)

    out_tm = pl.pallas_call(
        make_fused_bilstm_kernel(T, B, H),
        out_shape=jax.ShapeDtypeStruct((T * B, O), f32),
        grid_spec=pltpu.PrefetchScalarGridSpec(
            num_scalar_prefetch=0,
            grid=(1,),                                  # single grid step: everything resident
            in_specs=[
                full((T * B, 2 * I)),                   # x (+ reversed copy), time-major
                full((2 * I, 8 * H)),                   # block-diag input weights
                full((1, 8 * H)),                       # combined biases
                full((H2, 8 * H)),                      # block-diag recurrent weights
                full((H2, O)),                          # fused linear weight
                full((1, O)),                           # linear bias
            ],
            out_specs=full((T * B, O)),
            scratch_shapes=[pltpu.VMEM((T * B, H2), f32)],
        ),
        compiler_params=pltpu.CompilerParams(dimension_semantics=("arbitrary",)),
    )(x_pair, wi_big, b_big, wh_big, wl, params["b_lin"])

    # back to batch_first [B, T, O]
    return jnp.transpose(out_tm.reshape(T, B, O), (1, 0, 2))


# ---------------------------------------------------------------------------
# Pure-JAX reference (mirrors torch.nn.LSTM bidirectional + nn.Linear)
# ---------------------------------------------------------------------------
def reference(x, p):
    B, T, I = x.shape
    H = p["wh_f"].shape[0]

    def cell(x_t, h, c, wi, wh, b):
        gates = x_t @ wi + h @ wh + b
        i_g = jax.nn.sigmoid(gates[:, :H])
        f_g = jax.nn.sigmoid(gates[:, H:2 * H])
        g_g = jnp.tanh(gates[:, 2 * H:3 * H])
        o_g = jax.nn.sigmoid(gates[:, 3 * H:])
        c_new = f_g * c + i_g * g_g
        return o_g * jnp.tanh(c_new), c_new

    x_t = jnp.transpose(x, (1, 0, 2))
    init = (jnp.zeros((B, H), jnp.float32), jnp.zeros((B, H), jnp.float32))

    def fwd_step(carry, xt):
        h, c = cell(xt, carry[0], carry[1], p["wi_f"], p["wh_f"], p["b_f"])
        return (h, c), h

    def bwd_step(carry, xt):
        h, c = cell(xt, carry[0], carry[1], p["wi_b"], p["wh_b"], p["b_b"])
        return (h, c), h

    _, h_fwd = jax.lax.scan(fwd_step, init, x_t)
    _, h_bwd = jax.lax.scan(bwd_step, init, x_t[::-1])
    h_bwd = h_bwd[::-1]

    rec = jnp.concatenate([h_fwd, h_bwd], axis=-1)              # [T, B, 2H]
    w_lin = jnp.concatenate([p["wl_f"], p["wl_b"]], axis=0)     # [2H, O]
    out = rec @ w_lin + p["b_lin"]
    return jnp.transpose(out, (1, 0, 2))


# ---------------------------------------------------------------------------
# Main
# ---------------------------------------------------------------------------
if __name__ == "__main__":
    B, T, I, H, O = 2, 8, 32, 32, 16   # batch, seq, input_size, hidden_size, output_size

    key = jax.random.PRNGKey(0)
    ks = jax.random.split(key, 12)
    bound = 1.0 / jnp.sqrt(jnp.float32(H))   # PyTorch default LSTM/Linear init scale
    u = lambda k, shape: jax.random.uniform(k, shape, jnp.float32, -bound, bound)

    params = {
        # LSTM weights stored pre-transposed ([in, 4H]); gate order i, f, g, o.
        "wi_f": u(ks[0], (I, 4 * H)),
        "wh_f": u(ks[1], (H, 4 * H)),
        "b_f":  u(ks[2], (1, 4 * H)) + u(ks[3], (1, 4 * H)),   # b_ih + b_hh
        "wi_b": u(ks[4], (I, 4 * H)),
        "wh_b": u(ks[5], (H, 4 * H)),
        "b_b":  u(ks[6], (1, 4 * H)) + u(ks[7], (1, 4 * H)),
        # Linear: weight [O, 2H] in torch -> stored transposed and split by direction.
        "wl_f": u(ks[8], (H, O)),
        "wl_b": u(ks[9], (H, O)),
        "b_lin": u(ks[10], (1, O)),
    }

    x = jax.random.normal(ks[11], (B, T, I), jnp.float32)

    out = bidirectional_lstm(x, params)
    out = jax.block_until_ready(out)

    ref = reference(x, params)
    assert out.shape == (B, T, O), out.shape
    assert jnp.allclose(out, ref, atol=1e-4, rtol=1e-4), (
        f"max abs err {jnp.max(jnp.abs(out - ref))}")

    print("KERNEL_OK")
</pallas_src>

<mosaic_0001>
module attributes {stable_mosaic.version = 11 : i64} {
  func.func @kernel(%arg0: i32, %arg1: memref<16x64xf32, #tpu.memory_space<vmem>>, %arg2: memref<64x256xf32, #tpu.memory_space<vmem>>, %arg3: memref<1x256xf32, #tpu.memory_space<vmem>>, %arg4: memref<64x256xf32, #tpu.memory_space<vmem>>, %arg5: memref<64x16xf32, #tpu.memory_space<vmem>>, %arg6: memref<1x16xf32, #tpu.memory_space<vmem>>, %arg7: memref<16x16xf32, #tpu.memory_space<vmem>>, %arg8: memref<16x64xf32, #tpu.memory_space<vmem>>) attributes {dimension_semantics = [#tpu.dimension_semantics<arbitrary>], iteration_bounds = array<i64: 1>, scalar_prefetch = 0 : i64, scratch_operands = 1 : i64, tpu.core_type = #tpu.core_type<tc>, window_params = [{pipeline_mode = #tpu.pipeline_mode<synchronous>, transform_indices = @transform_0, window_bounds = array<i64: 16, 64>}, {pipeline_mode = #tpu.pipeline_mode<synchronous>, transform_indices = @transform_1, window_bounds = array<i64: 64, 256>}, {pipeline_mode = #tpu.pipeline_mode<synchronous>, transform_indices = @transform_2, window_bounds = array<i64: 1, 256>}, {pipeline_mode = #tpu.pipeline_mode<synchronous>, transform_indices = @transform_3, window_bounds = array<i64: 64, 256>}, {pipeline_mode = #tpu.pipeline_mode<synchronous>, transform_indices = @transform_4, window_bounds = array<i64: 64, 16>}, {pipeline_mode = #tpu.pipeline_mode<synchronous>, transform_indices = @transform_5, window_bounds = array<i64: 1, 16>}, {pipeline_mode = #tpu.pipeline_mode<synchronous>, transform_indices = @transform_6, window_bounds = array<i64: 16, 16>}]} {
    %c0 = arith.constant 0 : index
    %c0_0 = arith.constant 0 : index
    %0 = vector.load %arg1[%c0, %c0_0] : memref<16x64xf32, #tpu.memory_space<vmem>>, vector<16x64xf32>
    %c0_1 = arith.constant 0 : index
    %c0_2 = arith.constant 0 : index
    %1 = vector.load %arg2[%c0_1, %c0_2] : memref<64x256xf32, #tpu.memory_space<vmem>>, vector<64x256xf32>
    %cst = arith.constant dense<0.000000e+00> : vector<16x256xf32>
    %2 = tpu.matmul %0, %1, %cst {dimension_numbers = #tpu.dot_dimension_numbers<[1], [0], [0], [1], [0, 0, 1, 1], [], []>} : vector<16x64xf32>, vector<64x256xf32>, vector<16x256xf32> -> vector<16x256xf32>
    %c0_3 = arith.constant 0 : index
    %c0_4 = arith.constant 0 : index
    %3 = vector.load %arg3[%c0_3, %c0_4] : memref<1x256xf32, #tpu.memory_space<vmem>>, vector<1x256xf32>
    %4 = vector.broadcast %3 : vector<1x256xf32> to vector<16x256xf32>
    %5 = arith.addf %2, %4 : vector<16x256xf32>
    %6 = vector.extract_strided_slice %5 {offsets = [0, 0], sizes = [2, 256], strides = [1, 1]} : vector<16x256xf32> to vector<2x256xf32>
    %7 = vector.extract_strided_slice %5 {offsets = [2, 0], sizes = [2, 256], strides = [1, 1]} : vector<16x256xf32> to vector<2x256xf32>
    %8 = vector.extract_strided_slice %5 {offsets = [4, 0], sizes = [2, 256], strides = [1, 1]} : vector<16x256xf32> to vector<2x256xf32>
    %9 = vector.extract_strided_slice %5 {offsets = [6, 0], sizes = [2, 256], strides = [1, 1]} : vector<16x256xf32> to vector<2x256xf32>
    %10 = vector.extract_strided_slice %5 {offsets = [8, 0], sizes = [2, 256], strides = [1, 1]} : vector<16x256xf32> to vector<2x256xf32>
    %11 = vector.extract_strided_slice %5 {offsets = [10, 0], sizes = [2, 256], strides = [1, 1]} : vector<16x256xf32> to vector<2x256xf32>
    %12 = vector.extract_strided_slice %5 {offsets = [12, 0], sizes = [2, 256], strides = [1, 1]} : vector<16x256xf32> to vector<2x256xf32>
    %13 = vector.extract_strided_slice %5 {offsets = [14, 0], sizes = [2, 256], strides = [1, 1]} : vector<16x256xf32> to vector<2x256xf32>
    %c0_5 = arith.constant 0 : index
    %c0_6 = arith.constant 0 : index
    %14 = vector.load %arg4[%c0_5, %c0_6] : memref<64x256xf32, #tpu.memory_space<vmem>>, vector<64x256xf32>
    %cst_7 = arith.constant 0.000000e+00 : f32
    %15 = vector.broadcast %cst_7 : f32 to vector<2x64xf32>
    %cst_8 = arith.constant 0.000000e+00 : f32
    %16 = vector.broadcast %cst_8 : f32 to vector<2x64xf32>
    %cst_9 = arith.constant dense<0.000000e+00> : vector<2x256xf32>
    %17 = tpu.matmul %15, %14, %cst_9 {dimension_numbers = #tpu.dot_dimension_numbers<[1], [0], [0], [1], [0, 0, 1, 1], [], []>} : vector<2x64xf32>, vector<64x256xf32>, vector<2x256xf32> -> vector<2x256xf32>
    %18 = arith.addf %6, %17 : vector<2x256xf32>
    %19 = math.tanh %18 : vector<2x256xf32>
    %cst_10 = arith.constant 5.000000e-01 : f32
    %20 = vector.broadcast %cst_10 : f32 to vector<2x256xf32>
    %21 = arith.mulf %19, %20 : vector<2x256xf32>
    %cst_11 = arith.constant 5.000000e-01 : f32
    %22 = vector.broadcast %cst_11 : f32 to vector<2x256xf32>
    %23 = arith.addf %21, %22 : vector<2x256xf32>
    %24 = vector.extract_strided_slice %23 {offsets = [0, 0], sizes = [2, 64], strides = [1, 1]} : vector<2x256xf32> to vector<2x64xf32>
    %25 = vector.extract_strided_slice %23 {offsets = [0, 64], sizes = [2, 64], strides = [1, 1]} : vector<2x256xf32> to vector<2x64xf32>
    %26 = vector.extract_strided_slice %19 {offsets = [0, 128], sizes = [2, 64], strides = [1, 1]} : vector<2x256xf32> to vector<2x64xf32>
    %27 = vector.extract_strided_slice %23 {offsets = [0, 192], sizes = [2, 64], strides = [1, 1]} : vector<2x256xf32> to vector<2x64xf32>
    %28 = arith.mulf %25, %16 : vector<2x64xf32>
    %29 = arith.mulf %24, %26 : vector<2x64xf32>
    %30 = arith.addf %28, %29 : vector<2x64xf32>
    %31 = math.tanh %30 : vector<2x64xf32>
    %32 = arith.mulf %27, %31 : vector<2x64xf32>
    %33 = vector.extract_strided_slice %32 {offsets = [0, 0], sizes = [2, 32], strides = [1, 1]} : vector<2x64xf32> to vector<2x32xf32>
    %c0_12 = arith.constant 0 : index
    %c0_13 = arith.constant 0 : index
    %34 = vector.load %arg8[%c0_12, %c0_13] : memref<16x64xf32, #tpu.memory_space<vmem>>, vector<2x32xf32>
    tpu.vector_store %arg8[%c0_12, %c0_13], %33 {strides = array<i32>} : memref<16x64xf32, #tpu.memory_space<vmem>>, vector<2x32xf32>,
    %35 = vector.extract_strided_slice %32 {offsets = [0, 32], sizes = [2, 32], strides = [1, 1]} : vector<2x64xf32> to vector<2x32xf32>
    %c14 = arith.constant 14 : index
    %c32 = arith.constant 32 : index
    %36 = vector.load %arg8[%c14, %c32] : memref<16x64xf32, #tpu.memory_space<vmem>>, vector<2x32xf32>
    tpu.vector_store %arg8[%c14, %c32], %35 {strides = array<i32>} : memref<16x64xf32, #tpu.memory_space<vmem>>, vector<2x32xf32>,
    %cst_14 = arith.constant dense<0.000000e+00> : vector<2x256xf32>
    %37 = tpu.matmul %32, %14, %cst_14 {dimension_numbers = #tpu.dot_dimension_numbers<[1], [0], [0], [1], [0, 0, 1, 1], [], []>} : vector<2x64xf32>, vector<64x256xf32>, vector<2x256xf32> -> vector<2x256xf32>
    %38 = arith.addf %7, %37 : vector<2x256xf32>
    %39 = math.tanh %38 : vector<2x256xf32>
    %cst_15 = arith.constant 5.000000e-01 : f32
    %40 = vector.broadcast %cst_15 : f32 to vector<2x256xf32>
    %41 = arith.mulf %39, %40 : vector<2x256xf32>
    %cst_16 = arith.constant 5.000000e-01 : f32
    %42 = vector.broadcast %cst_16 : f32 to vector<2x256xf32>
    %43 = arith.addf %41, %42 : vector<2x256xf32>
    %44 = vector.extract_strided_slice %43 {offsets = [0, 0], sizes = [2, 64], strides = [1, 1]} : vector<2x256xf32> to vector<2x64xf32>
    %45 = vector.extract_strided_slice %43 {offsets = [0, 64], sizes = [2, 64], strides = [1, 1]} : vector<2x256xf32> to vector<2x64xf32>
    %46 = vector.extract_strided_slice %39 {offsets = [0, 128], sizes = [2, 64], strides = [1, 1]} : vector<2x256xf32> to vector<2x64xf32>
    %47 = vector.extract_strided_slice %43 {offsets = [0, 192], sizes = [2, 64], strides = [1, 1]} : vector<2x256xf32> to vector<2x64xf32>
    %48 = arith.mulf %45, %30 : vector<2x64xf32>
    %49 = arith.mulf %44, %46 : vector<2x64xf32>
    %50 = arith.addf %48, %49 : vector<2x64xf32>
    %51 = math.tanh %50 : vector<2x64xf32>
    %52 = arith.mulf %47, %51 : vector<2x64xf32>
    %53 = vector.extract_strided_slice %52 {offsets = [0, 0], sizes = [2, 32], strides = [1, 1]} : vector<2x64xf32> to vector<2x32xf32>
    %c2 = arith.constant 2 : index
    %c0_17 = arith.constant 0 : index
    %54 = vector.load %arg8[%c2, %c0_17] : memref<16x64xf32, #tpu.memory_space<vmem>>, vector<2x32xf32>
    tpu.vector_store %arg8[%c2, %c0_17], %53 {strides = array<i32>} : memref<16x64xf32, #tpu.memory_space<vmem>>, vector<2x32xf32>,
    %55 = vector.extract_strided_slice %52 {offsets = [0, 32], sizes = [2, 32], strides = [1, 1]} : vector<2x64xf32> to vector<2x32xf32>
    %c12 = arith.constant 12 : index
    %c32_18 = arith.constant 32 : index
    %56 = vector.load %arg8[%c12, %c32_18] : memref<16x64xf32, #tpu.memory_space<vmem>>, vector<2x32xf32>
    tpu.vector_store %arg8[%c12, %c32_18], %55 {strides = array<i32>} : memref<16x64xf32, #tpu.memory_space<vmem>>, vector<2x32xf32>,
    %cst_19 = arith.constant dense<0.000000e+00> : vector<2x256xf32>
    %57 = tpu.matmul %52, %14, %cst_19 {dimension_numbers = #tpu.dot_dimension_numbers<[1], [0], [0], [1], [0, 0, 1, 1], [], []>} : vector<2x64xf32>, vector<64x256xf32>, vector<2x256xf32> -> vector<2x256xf32>
    %58 = arith.addf %8, %57 : vector<2x256xf32>
    %59 = math.tanh %58 : vector<2x256xf32>
    %cst_20 = arith.constant 5.000000e-01 : f32
    %60 = vector.broadcast %cst_20 : f32 to vector<2x256xf32>
    %61 = arith.mulf %59, %60 : vector<2x256xf32>
    %cst_21 = arith.constant 5.000000e-01 : f32
    %62 = vector.broadcast %cst_21 : f32 to vector<2x256xf32>
    %63 = arith.addf %61, %62 : vector<2x256xf32>
    %64 = vector.extract_strided_slice %63 {offsets = [0, 0], sizes = [2, 64], strides = [1, 1]} : vector<2x256xf32> to vector<2x64xf32>
    %65 = vector.extract_strided_slice %63 {offsets = [0, 64], sizes = [2, 64], strides = [1, 1]} : vector<2x256xf32> to vector<2x64xf32>
    %66 = vector.extract_strided_slice %59 {offsets = [0, 128], sizes = [2, 64], strides = [1, 1]} : vector<2x256xf32> to vector<2x64xf32>
    %67 = vector.extract_strided_slice %63 {offsets = [0, 192], sizes = [2, 64], strides = [1, 1]} : vector<2x256xf32> to vector<2x64xf32>
    %68 = arith.mulf %65, %50 : vector<2x64xf32>
    %69 = arith.mulf %64, %66 : vector<2x64xf32>
    %70 = arith.addf %68, %69 : vector<2x64xf32>
    %71 = math.tanh %70 : vector<2x64xf32>
    %72 = arith.mulf %67, %71 : vector<2x64xf32>
    %73 = vector.extract_strided_slice %72 {offsets = [0, 0], sizes = [2, 32], strides = [1, 1]} : vector<2x64xf32> to vector<2x32xf32>
    %c4 = arith.constant 4 : index
    %c0_22 = arith.constant 0 : index
    %74 = vector.load %arg8[%c4, %c0_22] : memref<16x64xf32, #tpu.memory_space<vmem>>, vector<2x32xf32>
    tpu.vector_store %arg8[%c4, %c0_22], %73 {strides = array<i32>} : memref<16x64xf32, #tpu.memory_space<vmem>>, vector<2x32xf32>,
    %75 = vector.extract_strided_slice %72 {offsets = [0, 32], sizes = [2, 32], strides = [1, 1]} : vector<2x64xf32> to vector<2x32xf32>
    %c10 = arith.constant 10 : index
    %c32_23 = arith.constant 32 : index
    %76 = vector.load %arg8[%c10, %c32_23] : memref<16x64xf32, #tpu.memory_space<vmem>>, vector<2x32xf32>
    tpu.vector_store %arg8[%c10, %c32_23], %75 {strides = array<i32>} : memref<16x64xf32, #tpu.memory_space<vmem>>, vector<2x32xf32>,
    %cst_24 = arith.constant dense<0.000000e+00> : vector<2x256xf32>
    %77 = tpu.matmul %72, %14, %cst_24 {dimension_numbers = #tpu.dot_dimension_numbers<[1], [0], [0], [1], [0, 0, 1, 1], [], []>} : vector<2x64xf32>, vector<64x256xf32>, vector<2x256xf32> -> vector<2x256xf32>
    %78 = arith.addf %9, %77 : vector<2x256xf32>
    %79 = math.tanh %78 : vector<2x256xf32>
    %cst_25 = arith.constant 5.000000e-01 : f32
    %80 = vector.broadcast %cst_25 : f32 to vector<2x256xf32>
    %81 = arith.mulf %79, %80 : vector<2x256xf32>
    %cst_26 = arith.constant 5.000000e-01 : f32
    %82 = vector.broadcast %cst_26 : f32 to vector<2x256xf32>
    %83 = arith.addf %81, %82 : vector<2x256xf32>
    %84 = vector.extract_strided_slice %83 {offsets = [0, 0], sizes = [2, 64], strides = [1, 1]} : vector<2x256xf32> to vector<2x64xf32>
    %85 = vector.extract_strided_slice %83 {offsets = [0, 64], sizes = [2, 64], strides = [1, 1]} : vector<2x256xf32> to vector<2x64xf32>
    %86 = vector.extract_strided_slice %79 {offsets = [0, 128], sizes = [2, 64], strides = [1, 1]} : vector<2x256xf32> to vector<2x64xf32>
    %87 = vector.extract_strided_slice %83 {offsets = [0, 192], sizes = [2, 64], strides = [1, 1]} : vector<2x256xf32> to vector<2x64xf32>
    %88 = arith.mulf %85, %70 : vector<2x64xf32>
    %89 = arith.mulf %84, %86 : vector<2x64xf32>
    %90 = arith.addf %88, %89 : vector<2x64xf32>
    %91 = math.tanh %90 : vector<2x64xf32>
    %92 = arith.mulf %87, %91 : vector<2x64xf32>
    %93 = vector.extract_strided_slice %92 {offsets = [0, 0], sizes = [2, 32], strides = [1, 1]} : vector<2x64xf32> to vector<2x32xf32>
    %c6 = arith.constant 6 : index
    %c0_27 = arith.constant 0 : index
    %94 = vector.load %arg8[%c6, %c0_27] : memref<16x64xf32, #tpu.memory_space<vmem>>, vector<2x32xf32>
    tpu.vector_store %arg8[%c6, %c0_27], %93 {strides = array<i32>} : memref<16x64xf32, #tpu.memory_space<vmem>>, vector<2x32xf32>,
    %95 = vector.extract_strided_slice %92 {offsets = [0, 32], sizes = [2, 32], strides = [1, 1]} : vector<2x64xf32> to vector<2x32xf32>
    %c8 = arith.constant 8 : index
    %c32_28 = arith.constant 32 : index
    %96 = vector.load %arg8[%c8, %c32_28] : memref<16x64xf32, #tpu.memory_space<vmem>>, vector<2x32xf32>
    tpu.vector_store %arg8[%c8, %c32_28], %95 {strides = array<i32>} : memref<16x64xf32, #tpu.memory_space<vmem>>, vector<2x32xf32>,
    %cst_29 = arith.constant dense<0.000000e+00> : vector<2x256xf32>
    %97 = tpu.matmul %92, %14, %cst_29 {dimension_numbers = #tpu.dot_dimension_numbers<[1], [0], [0], [1], [0, 0, 1, 1], [], []>} : vector<2x64xf32>, vector<64x256xf32>, vector<2x256xf32> -> vector<2x256xf32>
    %98 = arith.addf %10, %97 : vector<2x256xf32>
    %99 = math.tanh %98 : vector<2x256xf32>
    %cst_30 = arith.constant 5.000000e-01 : f32
    %100 = vector.broadcast %cst_30 : f32 to vector<2x256xf32>
    %101 = arith.mulf %99, %100 : vector<2x256xf32>
    %cst_31 = arith.constant 5.000000e-01 : f32
    %102 = vector.broadcast %cst_31 : f32 to vector<2x256xf32>
    %103 = arith.addf %101, %102 : vector<2x256xf32>
    %104 = vector.extract_strided_slice %103 {offsets = [0, 0], sizes = [2, 64], strides = [1, 1]} : vector<2x256xf32> to vector<2x64xf32>
    %105 = vector.extract_strided_slice %103 {offsets = [0, 64], sizes = [2, 64], strides = [1, 1]} : vector<2x256xf32> to vector<2x64xf32>
    %106 = vector.extract_strided_slice %99 {offsets = [0, 128], sizes = [2, 64], strides = [1, 1]} : vector<2x256xf32> to vector<2x64xf32>
    %107 = vector.extract_strided_slice %103 {offsets = [0, 192], sizes = [2, 64], strides = [1, 1]} : vector<2x256xf32> to vector<2x64xf32>
    %108 = arith.mulf %105, %90 : vector<2x64xf32>
    %109 = arith.mulf %104, %106 : vector<2x64xf32>
    %110 = arith.addf %108, %109 : vector<2x64xf32>
    %111 = math.tanh %110 : vector<2x64xf32>
    %112 = arith.mulf %107, %111 : vector<2x64xf32>
    %113 = vector.extract_strided_slice %112 {offsets = [0, 0], sizes = [2, 32], strides = [1, 1]} : vector<2x64xf32> to vector<2x32xf32>
    %c8_32 = arith.constant 8 : index
    %c0_33 = arith.constant 0 : index
    %114 = vector.load %arg8[%c8_32, %c0_33] : memref<16x64xf32, #tpu.memory_space<vmem>>, vector<2x32xf32>
    tpu.vector_store %arg8[%c8_32, %c0_33], %113 {strides = array<i32>} : memref<16x64xf32, #tpu.memory_space<vmem>>, vector<2x32xf32>,
    %115 = vector.extract_strided_slice %112 {offsets = [0, 32], sizes = [2, 32], strides = [1, 1]} : vector<2x64xf32> to vector<2x32xf32>
    %c6_34 = arith.constant 6 : index
    %c32_35 = arith.constant 32 : index
    %116 = vector.load %arg8[%c6_34, %c32_35] : memref<16x64xf32, #tpu.memory_space<vmem>>, vector<2x32xf32>
    tpu.vector_store %arg8[%c6_34, %c32_35], %115 {strides = array<i32>} : memref<16x64xf32, #tpu.memory_space<vmem>>, vector<2x32xf32>,
    %cst_36 = arith.constant dense<0.000000e+00> : vector<2x256xf32>
    %117 = tpu.matmul %112, %14, %cst_36 {dimension_numbers = #tpu.dot_dimension_numbers<[1], [0], [0], [1], [0, 0, 1, 1], [], []>} : vector<2x64xf32>, vector<64x256xf32>, vector<2x256xf32> -> vector<2x256xf32>
    %118 = arith.addf %11, %117 : vector<2x256xf32>
    %119 = math.tanh %118 : vector<2x256xf32>
    %cst_37 = arith.constant 5.000000e-01 : f32
    %120 = vector.broadcast %cst_37 : f32 to vector<2x256xf32>
    %121 = arith.mulf %119, %120 : vector<2x256xf32>
    %cst_38 = arith.constant 5.000000e-01 : f32
    %122 = vector.broadcast %cst_38 : f32 to vector<2x256xf32>
    %123 = arith.addf %121, %122 : vector<2x256xf32>
    %124 = vector.extract_strided_slice %123 {offsets = [0, 0], sizes = [2, 64], strides = [1, 1]} : vector<2x256xf32> to vector<2x64xf32>
    %125 = vector.extract_strided_slice %123 {offsets = [0, 64], sizes = [2, 64], strides = [1, 1]} : vector<2x256xf32> to vector<2x64xf32>
    %126 = vector.extract_strided_slice %119 {offsets = [0, 128], sizes = [2, 64], strides = [1, 1]} : vector<2x256xf32> to vector<2x64xf32>
    %127 = vector.extract_strided_slice %123 {offsets = [0, 192], sizes = [2, 64], strides = [1, 1]} : vector<2x256xf32> to vector<2x64xf32>
    %128 = arith.mulf %125, %110 : vector<2x64xf32>
    %129 = arith.mulf %124, %126 : vector<2x64xf32>
    %130 = arith.addf %128, %129 : vector<2x64xf32>
    %131 = math.tanh %130 : vector<2x64xf32>
    %132 = arith.mulf %127, %131 : vector<2x64xf32>
    %133 = vector.extract_strided_slice %132 {offsets = [0, 0], sizes = [2, 32], strides = [1, 1]} : vector<2x64xf32> to vector<2x32xf32>
    %c10_39 = arith.constant 10 : index
    %c0_40 = arith.constant 0 : index
    %134 = vector.load %arg8[%c10_39, %c0_40] : memref<16x64xf32, #tpu.memory_space<vmem>>, vector<2x32xf32>
    tpu.vector_store %arg8[%c10_39, %c0_40], %133 {strides = array<i32>} : memref<16x64xf32, #tpu.memory_space<vmem>>, vector<2x32xf32>,
    %135 = vector.extract_strided_slice %132 {offsets = [0, 32], sizes = [2, 32], strides = [1, 1]} : vector<2x64xf32> to vector<2x32xf32>
    %c4_41 = arith.constant 4 : index
    %c32_42 = arith.constant 32 : index
    %136 = vector.load %arg8[%c4_41, %c32_42] : memref<16x64xf32, #tpu.memory_space<vmem>>, vector<2x32xf32>
    tpu.vector_store %arg8[%c4_41, %c32_42], %135 {strides = array<i32>} : memref<16x64xf32, #tpu.memory_space<vmem>>, vector<2x32xf32>,
    %cst_43 = arith.constant dense<0.000000e+00> : vector<2x256xf32>
    %137 = tpu.matmul %132, %14, %cst_43 {dimension_numbers = #tpu.dot_dimension_numbers<[1], [0], [0], [1], [0, 0, 1, 1], [], []>} : vector<2x64xf32>, vector<64x256xf32>, vector<2x256xf32> -> vector<2x256xf32>
    %138 = arith.addf %12, %137 : vector<2x256xf32>
    %139 = math.tanh %138 : vector<2x256xf32>
    %cst_44 = arith.constant 5.000000e-01 : f32
    %140 = vector.broadcast %cst_44 : f32 to vector<2x256xf32>
    %141 = arith.mulf %139, %140 : vector<2x256xf32>
    %cst_45 = arith.constant 5.000000e-01 : f32
    %142 = vector.broadcast %cst_45 : f32 to vector<2x256xf32>
    %143 = arith.addf %141, %142 : vector<2x256xf32>
    %144 = vector.extract_strided_slice %143 {offsets = [0, 0], sizes = [2, 64], strides = [1, 1]} : vector<2x256xf32> to vector<2x64xf32>
    %145 = vector.extract_strided_slice %143 {offsets = [0, 64], sizes = [2, 64], strides = [1, 1]} : vector<2x256xf32> to vector<2x64xf32>
    %146 = vector.extract_strided_slice %139 {offsets = [0, 128], sizes = [2, 64], strides = [1, 1]} : vector<2x256xf32> to vector<2x64xf32>
    %147 = vector.extract_strided_slice %143 {offsets = [0, 192], sizes = [2, 64], strides = [1, 1]} : vector<2x256xf32> to vector<2x64xf32>
    %148 = arith.mulf %145, %130 : vector<2x64xf32>
    %149 = arith.mulf %144, %146 : vector<2x64xf32>
    %150 = arith.addf %148, %149 : vector<2x64xf32>
    %151 = math.tanh %150 : vector<2x64xf32>
    %152 = arith.mulf %147, %151 : vector<2x64xf32>
    %153 = vector.extract_strided_slice %152 {offsets = [0, 0], sizes = [2, 32], strides = [1, 1]} : vector<2x64xf32> to vector<2x32xf32>
    %c12_46 = arith.constant 12 : index
    %c0_47 = arith.constant 0 : index
    %154 = vector.load %arg8[%c12_46, %c0_47] : memref<16x64xf32, #tpu.memory_space<vmem>>, vector<2x32xf32>
    tpu.vector_store %arg8[%c12_46, %c0_47], %153 {strides = array<i32>} : memref<16x64xf32, #tpu.memory_space<vmem>>, vector<2x32xf32>,
    %155 = vector.extract_strided_slice %152 {offsets = [0, 32], sizes = [2, 32], strides = [1, 1]} : vector<2x64xf32> to vector<2x32xf32>
    %c2_48 = arith.constant 2 : index
    %c32_49 = arith.constant 32 : index
    %156 = vector.load %arg8[%c2_48, %c32_49] : memref<16x64xf32, #tpu.memory_space<vmem>>, vector<2x32xf32>
    tpu.vector_store %arg8[%c2_48, %c32_49], %155 {strides = array<i32>} : memref<16x64xf32, #tpu.memory_space<vmem>>, vector<2x32xf32>,
    %cst_50 = arith.constant dense<0.000000e+00> : vector<2x256xf32>
    %157 = tpu.matmul %152, %14, %cst_50 {dimension_numbers = #tpu.dot_dimension_numbers<[1], [0], [0], [1], [0, 0, 1, 1], [], []>} : vector<2x64xf32>, vector<64x256xf32>, vector<2x256xf32> -> vector<2x256xf32>
    %158 = arith.addf %13, %157 : vector<2x256xf32>
    %159 = math.tanh %158 : vector<2x256xf32>
    %cst_51 = arith.constant 5.000000e-01 : f32
    %160 = vector.broadcast %cst_51 : f32 to vector<2x256xf32>
    %161 = arith.mulf %159, %160 : vector<2x256xf32>
    %cst_52 = arith.constant 5.000000e-01 : f32
    %162 = vector.broadcast %cst_52 : f32 to vector<2x256xf32>
    %163 = arith.addf %161, %162 : vector<2x256xf32>
    %164 = vector.extract_strided_slice %163 {offsets = [0, 0], sizes = [2, 64], strides = [1, 1]} : vector<2x256xf32> to vector<2x64xf32>
    %165 = vector.extract_strided_slice %163 {offsets = [0, 64], sizes = [2, 64], strides = [1, 1]} : vector<2x256xf32> to vector<2x64xf32>
    %166 = vector.extract_strided_slice %159 {offsets = [0, 128], sizes = [2, 64], strides = [1, 1]} : vector<2x256xf32> to vector<2x64xf32>
    %167 = vector.extract_strided_slice %163 {offsets = [0, 192], sizes = [2, 64], strides = [1, 1]} : vector<2x256xf32> to vector<2x64xf32>
    %168 = arith.mulf %165, %150 : vector<2x64xf32>
    %169 = arith.mulf %164, %166 : vector<2x64xf32>
    %170 = arith.addf %168, %169 : vector<2x64xf32>
    %171 = math.tanh %170 : vector<2x64xf32>
    %172 = arith.mulf %167, %171 : vector<2x64xf32>
    %173 = vector.extract_strided_slice %172 {offsets = [0, 0], sizes = [2, 32], strides = [1, 1]} : vector<2x64xf32> to vector<2x32xf32>
    %c14_53 = arith.constant 14 : index
    %c0_54 = arith.constant 0 : index
    %174 = vector.load %arg8[%c14_53, %c0_54] : memref<16x64xf32, #tpu.memory_space<vmem>>, vector<2x32xf32>
    tpu.vector_store %arg8[%c14_53, %c0_54], %173 {strides = array<i32>} : memref<16x64xf32, #tpu.memory_space<vmem>>, vector<2x32xf32>,
    %175 = vector.extract_strided_slice %172 {offsets = [0, 32], sizes = [2, 32], strides = [1, 1]} : vector<2x64xf32> to vector<2x32xf32>
    %c0_55 = arith.constant 0 : index
    %c32_56 = arith.constant 32 : index
    %176 = vector.load %arg8[%c0_55, %c32_56] : memref<16x64xf32, #tpu.memory_space<vmem>>, vector<2x32xf32>
    tpu.vector_store %arg8[%c0_55, %c32_56], %175 {strides = array<i32>} : memref<16x64xf32, #tpu.memory_space<vmem>>, vector<2x32xf32>,
    %c0_57 = arith.constant 0 : index
    %c0_58 = arith.constant 0 : index
    %177 = vector.load %arg8[%c0_57, %c0_58] : memref<16x64xf32, #tpu.memory_space<vmem>>, vector<16x64xf32>
    %c0_59 = arith.constant 0 : index
    %c0_60 = arith.constant 0 : index
    %178 = vector.load %arg5[%c0_59, %c0_60] : memref<64x16xf32, #tpu.memory_space<vmem>>, vector<64x16xf32>
    %cst_61 = arith.constant dense<0.000000e+00> : vector<16x16xf32>
    %179 = tpu.matmul %177, %178, %cst_61 {dimension_numbers = #tpu.dot_dimension_numbers<[1], [0], [0], [1], [0, 0, 1, 1], [], []>} : vector<16x64xf32>, vector<64x16xf32>, vector<16x16xf32> -> vector<16x16xf32>
    %c0_62 = arith.constant 0 : index
    %c0_63 = arith.constant 0 : index
    %180 = vector.load %arg6[%c0_62, %c0_63] : memref<1x16xf32, #tpu.memory_space<vmem>>, vector<1x16xf32>
    %181 = vector.broadcast %180 : vector<1x16xf32> to vector<16x16xf32>
    %182 = arith.addf %179, %181 : vector<16x16xf32>
    %c0_64 = arith.constant 0 : index
    %c0_65 = arith.constant 0 : index
    %183 = vector.load %arg7[%c0_64, %c0_65] : memref<16x16xf32, #tpu.memory_space<vmem>>, vector<16x16xf32>
    tpu.vector_store %arg7[%c0_64, %c0_65], %182 {strides = array<i32>} : memref<16x16xf32, #tpu.memory_space<vmem>>, vector<16x16xf32>,
    return
  }
  func.func @transform_0(%arg0: i32) -> (i32, i32) {
    %c0_i32 = arith.constant 0 : i32
    %c0_i32_0 = arith.constant 0 : i32
    %c0_i32_1 = arith.constant 0 : i32
    return %c0_i32, %c0_i32_0 : i32, i32
  }
  func.func @transform_1(%arg0: i32) -> (i32, i32) {
    %c0_i32 = arith.constant 0 : i32
    %c0_i32_0 = arith.constant 0 : i32
    %c0_i32_1 = arith.constant 0 : i32
    return %c0_i32, %c0_i32_0 : i32, i32
  }
  func.func @transform_2(%arg0: i32) -> (i32, i32) {
    %c0_i32 = arith.constant 0 : i32
    %c0_i32_0 = arith.constant 0 : i32
    %c0_i32_1 = arith.constant 0 : i32
    return %c0_i32, %c0_i32_0 : i32, i32
  }
  func.func @transform_3(%arg0: i32) -> (i32, i32) {
    %c0_i32 = arith.constant 0 : i32
    %c0_i32_0 = arith.constant 0 : i32
    %c0_i32_1 = arith.constant 0 : i32
    return %c0_i32, %c0_i32_0 : i32, i32
  }
  func.func @transform_4(%arg0: i32) -> (i32, i32) {
    %c0_i32 = arith.constant 0 : i32
    %c0_i32_0 = arith.constant 0 : i32
    %c0_i32_1 = arith.constant 0 : i32
    return %c0_i32, %c0_i32_0 : i32, i32
  }
  func.func @transform_5(%arg0: i32) -> (i32, i32) {
    %c0_i32 = arith.constant 0 : i32
    %c0_i32_0 = arith.constant 0 : i32
    %c0_i32_1 = arith.constant 0 : i32
    return %c0_i32, %c0_i32_0 : i32, i32
  }
  func.func @transform_6(%arg0: i32) -> (i32, i32) {
    %c0_i32 = arith.constant 0 : i32
    %c0_i32_0 = arith.constant 0 : i32
    %c0_i32_1 = arith.constant 0 : i32
    return %c0_i32, %c0_i32_0 : i32, i32
  }
}

</mosaic_0001>

<llo_original>
// kernel: bidirectional_lstm.1
$region0: #{bidirectional_lstm.1}
  #allocation0 [shape = 'u32[]', space=smem, size = 0x4, offset = 0x4, fixed_abs, tag = 'smem constant byte address 0x4 - core index']
  #allocation1 [shape = 'u32[144,128]{1,0:T(1,128)}', space=vmem, size = 0x12000, scoped, tag = 'internal scratch']
  #allocation2 [shape = 'f32[16,64]{1,0:T(8,128)}', space=vmem, size = 0x2000, scoped, tag = 'scratch operand']
  %s0 = inlined_call_operand.vmem [shape: f32[16,64], index: 0, kind: input, shape index: {}]
  %s1 = inlined_call_operand.vmem [shape: f32[64,256], index: 1, kind: input, shape index: {}]
  %s2 = inlined_call_operand.vmem [shape: f32[1,256], index: 2, kind: input, shape index: {}]
  %s3 = inlined_call_operand.vmem [shape: f32[64,256], index: 3, kind: input, shape index: {}]
  %s4 = inlined_call_operand.vmem [shape: f32[64,16], index: 4, kind: input, shape index: {}]
  %s5 = inlined_call_operand.vmem [shape: f32[1,16], index: 5, kind: input, shape index: {}]
  %s6 = inlined_call_operand.vmem [shape: f32[16,16], index: 6, kind: output, shape index: {}]
  %s7 = sld [smem:[#allocation0]]
  $region34: #{bidirectional_lstm.1} parent=0
    _
  %s9 = ssub.s32 1, %s7
  %s10 = scalar_select 0, %s9, %s7
  // Predicated region
  $region2: #{bidirectional_lstm.1} parent=0 // pred_check
    _
  $region3: #{bidirectional_lstm.1} parent=0 // pred_check_branch
    %12 = sbr.rel (0) target = $region5
  $region4: #{bidirectional_lstm.1} parent=0 // pred_region
    _
  $region5: #{bidirectional_lstm.1} parent=0 // pred_fallthru
    _
  // Predicated region
  $region6: #{bidirectional_lstm.1} parent=0 // pred_check
    _
  $region7: #{bidirectional_lstm.1} parent=0 // pred_check_branch
    %14 = sbr.rel (0) target = $region9
  $region8: #{bidirectional_lstm.1} parent=0 // pred_region
    _
  $region9: #{bidirectional_lstm.1} parent=0 // pred_fallthru
    _
  // Predicated region
  $region10: #{bidirectional_lstm.1} parent=0 // pred_check
    _
  $region11: #{bidirectional_lstm.1} parent=0 // pred_check_branch
    %16 = sbr.rel (0) target = $region13
  $region12: #{bidirectional_lstm.1} parent=0 // pred_region
    _
  $region13: #{bidirectional_lstm.1} parent=0 // pred_fallthru
    _
  // Predicated region
  $region14: #{bidirectional_lstm.1} parent=0 // pred_check
    _
  $region15: #{bidirectional_lstm.1} parent=0 // pred_check_branch
    %18 = sbr.rel (0) target = $region17
  $region16: #{bidirectional_lstm.1} parent=0 // pred_region
    _
  $region17: #{bidirectional_lstm.1} parent=0 // pred_fallthru
    _
  // Predicated region
  $region18: #{bidirectional_lstm.1} parent=0 // pred_check
    _
  $region19: #{bidirectional_lstm.1} parent=0 // pred_check_branch
    %20 = sbr.rel (0) target = $region21
  $region20: #{bidirectional_lstm.1} parent=0 // pred_region
    _
  $region21: #{bidirectional_lstm.1} parent=0 // pred_fallthru
    _
  // Predicated region
  $region22: #{bidirectional_lstm.1} parent=0 // pred_check
    _
  $region23: #{bidirectional_lstm.1} parent=0 // pred_check_branch
    %22 = sbr.rel (0) target = $region25
  $region24: #{bidirectional_lstm.1} parent=0 // pred_region
    _
  $region25: #{bidirectional_lstm.1} parent=0 // pred_fallthru
    _
  %v23 = vld [vmem:[%s0] sm:$0xff]
  %v24 = vld [vmem:[%s0 + $0x8] sm:$0xff]
  %v25 = vld [vmem:[%s1] sm:$0xff]
  %v26 = vld [vmem:[%s1 + $0x8] sm:$0xff]
  %v27 = vld [vmem:[%s1 + $0x10] sm:$0xff]
  %v28 = vld [vmem:[%s1 + $0x18] sm:$0xff]
  %v29 = vld [vmem:[%s1 + $0x20] sm:$0xff]
  %v30 = vld [vmem:[%s1 + $0x28] sm:$0xff]
  %v31 = vld [vmem:[%s1 + $0x30] sm:$0xff]
  %v32 = vld [vmem:[%s1 + $0x38] sm:$0xff]
  %v33 = vld [vmem:[%s1 + $0x40] sm:$0xff]
  %v34 = vld [vmem:[%s1 + $0x48] sm:$0xff]
  %v35 = vld [vmem:[%s1 + $0x50] sm:$0xff]
  %v36 = vld [vmem:[%s1 + $0x58] sm:$0xff]
  %v37 = vld [vmem:[%s1 + $0x60] sm:$0xff]
  %v38 = vld [vmem:[%s1 + $0x68] sm:$0xff]
  %v39 = vld [vmem:[%s1 + $0x70] sm:$0xff]
  %v40 = vld [vmem:[%s1 + $0x78] sm:$0xff]
  %v41 = vld [vmem:[%s2] sm:$0x3]
  %v43 = vlaneseq
  %v44 = vshrl.u32 %v43, 7
  %v45 = vsub.s32 0, %v44
  %v46 = vrot.slane %v41, %v45
  %v47 = vlaneseq
  %v48 = vshrl.u32 %v47, 7
  %v49 = vsub.s32 1, %v48
  %v50 = vrot.slane %v41, %v49
  %vm53 = vcmask 523264
  %v55 = vsel %vm53, %v23, 0
  %v58 = vsel %vm53, %v24, 0
  %60 = vmatprep.subr.mxu0 %v26
  %61 = vmatpush1.msra.mxu0 %v25
  %62 = vmatprep.subr.mxu0 %v28
  %63 = vmatpush1.msra.mxu0 %v27
  %64 = vmatprep.subr.mxu0 %v30
  %65 = vmatpush1.msra.mxu0 %v29
  %66 = vmatprep.subr.mxu0 %v32
  %67 = vmatpush1.msra.mxu0 %v31
  %68 = vmatprep.subr.mxu0 %v34
  %69 = vmatpush1.msra.mxu0 %v33
  %70 = vmatprep.subr.mxu0 %v36
  %71 = vmatpush1.msra.mxu0 %v35
  %72 = vmatprep.subr.mxu0 %v38
  %73 = vmatpush1.msra.mxu0 %v37
  %74 = vmatprep.subr.mxu0 %v40
  %75 = vmatpush1.msra.mxu0 %v39
  %76 = vmatprep.subr.mxu0 0.0
  %77 = vmatpush1.msra.mxu0 0.0
  %78 = vmatprep.subr.mxu0 0.0
  %79 = vmatpush1.msra.mxu0 0.0
  %80 = vmatprep.subr.mxu0 0.0
  %81 = vmatpush1.msra.mxu0 0.0
  %82 = vmatprep.subr.mxu0 0.0
  %83 = vmatpush1.msra.mxu0 0.0
  %84 = vmatprep.subr.mxu0 0.0
  %85 = vmatpush1.msra.mxu0 0.0
  %86 = vmatprep.subr.mxu0 0.0
  %87 = vmatpush1.msra.mxu0 0.0
  %88 = vmatprep.subr.mxu0 0.0
  %89 = vmatpush1.msra.mxu0 0.0
  %90 = vmatprep.subr.mxu0 0.0
  %91 = vmatpush1.msra.mxu0 0.0
  %92 = vmatprep.subr.mxu0 0.0
  %93 = vmatpush1.msra.mxu0 0.0
  %94 = vmatprep.subr.mxu0 0.0
  %95 = vmatpush1.msra.mxu0 0.0
  %96 = vmatprep.subr.mxu0 0.0
  %97 = vmatpush1.msra.mxu0 0.0
  %98 = vmatprep.subr.mxu0 0.0
  %99 = vmatpush1.msra.mxu0 0.0
  %100 = vmatprep.subr.mxu0 0.0
  %101 = vmatpush1.msra.mxu0 0.0
  %102 = vmatprep.subr.mxu0 0.0
  %103 = vmatpush1.msra.mxu0 0.0
  %104 = vmatprep.subr.mxu0 0.0
  %105 = vmatpush1.msra.mxu0 0.0
  %106 = vmatprep.subr.mxu0 0.0
  %107 = vmatpush1.msra.mxu0 0.0
  %108 = vmatprep.subr.mxu0 0.0
  %109 = vmatpush1.msra.mxu0 0.0
  %110 = vmatprep.subr.mxu0 0.0
  %111 = vmatpush1.msra.mxu0 0.0
  %112 = vmatprep.subr.mxu0 0.0
  %113 = vmatpush1.msra.mxu0 0.0
  %114 = vmatprep.subr.mxu0 0.0
  %115 = vmatpush1.msra.mxu0 0.0
  %116 = vmatprep.subr.mxu0 0.0
  %117 = vmatpush1.msra.mxu0 0.0
  %118 = vmatprep.subr.mxu0 0.0
  %119 = vmatpush1.msra.mxu0 0.0
  %120 = vmatprep.subr.mxu0 0.0
  %121 = vmatpush1.msra.mxu0 0.0
  %122 = vmatprep.subr.mxu0 0.0
  %123 = vmatpush1.msra.mxu0 0.0
  %124 = vmatprep.mubr.f32.mxu0 0.0
  %125 = vmatmul.mubr.f32.gmra.mrb[0].mxu0 %v55
  %v126 = vpop.f32.mrb[0].mxu0
  %v127 = vadd.f32 %v46, %v126
  %v128 = vpop.f32.mrb[0].mxu0
  %v129 = vadd.f32 %v50, %v128
  %130 = vmatprep.mubr.f32.mxu0 0.0
  %131 = vmatmul.mubr.f32.gmra.mrb[0].mxu0 %v58
  %v132 = vpop.f32.mrb[0].mxu0
  %v133 = vadd.f32 %v46, %v132
  %v134 = vpop.f32.mrb[0].mxu0
  %v135 = vadd.f32 %v50, %v134
  %136 = vdwg.mxu0
  %v137 = vld [vmem:[%s3] sm:$0xff]
  %v138 = vld [vmem:[%s3 + $0x8] sm:$0xff]
  %v139 = vld [vmem:[%s3 + $0x10] sm:$0xff]
  %v140 = vld [vmem:[%s3 + $0x18] sm:$0xff]
  %v141 = vld [vmem:[%s3 + $0x20] sm:$0xff]
  %v142 = vld [vmem:[%s3 + $0x28] sm:$0xff]
  %v143 = vld [vmem:[%s3 + $0x30] sm:$0xff]
  %v144 = vld [vmem:[%s3 + $0x38] sm:$0xff]
  %v145 = vld [vmem:[%s3 + $0x40] sm:$0xff]
  %v146 = vld [vmem:[%s3 + $0x48] sm:$0xff]
  %v147 = vld [vmem:[%s3 + $0x50] sm:$0xff]
  %v148 = vld [vmem:[%s3 + $0x58] sm:$0xff]
  %v149 = vld [vmem:[%s3 + $0x60] sm:$0xff]
  %v150 = vld [vmem:[%s3 + $0x68] sm:$0xff]
  %v151 = vld [vmem:[%s3 + $0x70] sm:$0xff]
  %v152 = vld [vmem:[%s3 + $0x78] sm:$0xff]
  %v154 = vsel %vm53, 0.0, 0
  %156 = vmatprep.subr.mxu0 %v138
  %157 = vmatpush1.msra.mxu0 %v137
  %158 = vmatprep.subr.mxu0 %v140
  %159 = vmatpush1.msra.mxu0 %v139
  %160 = vmatprep.subr.mxu0 %v142
  %161 = vmatpush1.msra.mxu0 %v141
  %162 = vmatprep.subr.mxu0 %v144
  %163 = vmatpush1.msra.mxu0 %v143
  %164 = vmatprep.subr.mxu0 %v146
  %165 = vmatpush1.msra.mxu0 %v145
  %166 = vmatprep.subr.mxu0 %v148
  %167 = vmatpush1.msra.mxu0 %v147
  %168 = vmatprep.subr.mxu0 %v150
  %169 = vmatpush1.msra.mxu0 %v149
  %170 = vmatprep.subr.mxu0 %v152
  %171 = vmatpush1.msra.mxu0 %v151
  %172 = vmatprep.subr.mxu0 0.0
  %173 = vmatpush1.msra.mxu0 0.0
  %174 = vmatprep.subr.mxu0 0.0
  %175 = vmatpush1.msra.mxu0 0.0
  %176 = vmatprep.subr.mxu0 0.0
  %177 = vmatpush1.msra.mxu0 0.0
  %178 = vmatprep.subr.mxu0 0.0
  %179 = vmatpush1.msra.mxu0 0.0
  %180 = vmatprep.subr.mxu0 0.0
  %181 = vmatpush1.msra.mxu0 0.0
  %182 = vmatprep.subr.mxu0 0.0
  %183 = vmatpush1.msra.mxu0 0.0
  %184 = vmatprep.subr.mxu0 0.0
  %185 = vmatpush1.msra.mxu0 0.0
  %186 = vmatprep.subr.mxu0 0.0
  %187 = vmatpush1.msra.mxu0 0.0
  %188 = vmatprep.subr.mxu0 0.0
  %189 = vmatpush1.msra.mxu0 0.0
  %190 = vmatprep.subr.mxu0 0.0
  %191 = vmatpush1.msra.mxu0 0.0
  %192 = vmatprep.subr.mxu0 0.0
  %193 = vmatpush1.msra.mxu0 0.0
  %194 = vmatprep.subr.mxu0 0.0
  %195 = vmatpush1.msra.mxu0 0.0
  %196 = vmatprep.subr.mxu0 0.0
  %197 = vmatpush1.msra.mxu0 0.0
  %198 = vmatprep.subr.mxu0 0.0
  %199 = vmatpush1.msra.mxu0 0.0
  %200 = vmatprep.subr.mxu0 0.0
  %201 = vmatpush1.msra.mxu0 0.0
  %202 = vmatprep.subr.mxu0 0.0
  %203 = vmatpush1.msra.mxu0 0.0
  %204 = vmatprep.subr.mxu0 0.0
  %205 = vmatpush1.msra.mxu0 0.0
  %206 = vmatprep.subr.mxu0 0.0
  %207 = vmatpush1.msra.mxu0 0.0
  %208 = vmatprep.subr.mxu0 0.0
  %209 = vmatpush1.msra.mxu0 0.0
  %210 = vmatprep.subr.mxu0 0.0
  %211 = vmatpush1.msra.mxu0 0.0
  %212 = vmatprep.subr.mxu0 0.0
  %213 = vmatpush1.msra.mxu0 0.0
  %214 = vmatprep.subr.mxu0 0.0
  %215 = vmatpush1.msra.mxu0 0.0
  %216 = vmatprep.subr.mxu0 0.0
  %217 = vmatpush1.msra.mxu0 0.0
  %218 = vmatprep.subr.mxu0 0.0
  %219 = vmatpush1.msra.mxu0 0.0
  %220 = vmatprep.mubr.f32.mxu0 0.0
  %221 = vmatmul.mubr.f32.gmra.mrb[0].mxu0 %v154
  %v222 = vpop.f32.mrb[0].mxu0
  %v223 = vadd.f32 0.0, %v222
  %v224 = vpop.f32.mrb[0].mxu0
  %v225 = vadd.f32 0.0, %v224
  %226 = vdwg.mxu0
  %v227 = vadd.f32 %v127, %v223
  %v228 = vadd.f32 %v129, %v225
  %v229 = vtanh.pop %v227
  %v230 = vtanh.pop %v228
  %v231 = vmul.f32 %v229, 0.5
  %v232 = vmul.f32 %v230, 0.5
  %v233 = vadd.f32 %v231, 0.5
  %v234 = vadd.f32 %v232, 0.5
  %v235 = vmul.f32 %v233, 0.0
  %v236 = vmul.f32 %v233, %v230
  %238 = vrot.lane.b32.xlu0 %v236, 64
  %v239 = vpop.permute.xlu0 %238
  %v241 = vadd.f32 %v235, %v239
  %v242 = vtanh.pop %v241
  %v243 = vmul.f32 %v234, %v242
  %245 = vrot.lane.b32.xlu0 %v243, 64
  %v246 = vpop.permute.xlu0 %245
  %vm248 = vcmask 254976
  %249 = vst.msk [vmem:[#allocation2] sm:$0x3] %vm248, %v246
  %vm250 = vcmask 517376
  %251 = vst.msk [vmem:[#allocation2 + $0xe] sm:$0x3] %vm250, %v246
  %v252 = vsel %vm53, %v246, 0
  %254 = vmatprep.subr.mxu0 %v138
  %255 = vmatpush1.msra.mxu0 %v137
  %256 = vmatprep.subr.mxu0 %v140
  %257 = vmatpush1.msra.mxu0 %v139
  %258 = vmatprep.subr.mxu0 %v142
  %259 = vmatpush1.msra.mxu0 %v141
  %260 = vmatprep.subr.mxu0 %v144
  %261 = vmatpush1.msra.mxu0 %v143
  %262 = vmatprep.subr.mxu0 %v146
  %263 = vmatpush1.msra.mxu0 %v145
  %264 = vmatprep.subr.mxu0 %v148
  %265 = vmatpush1.msra.mxu0 %v147
  %266 = vmatprep.subr.mxu0 %v150
  %267 = vmatpush1.msra.mxu0 %v149
  %268 = vmatprep.subr.mxu0 %v152
  %269 = vmatpush1.msra.mxu0 %v151
  %270 = vmatprep.subr.mxu0 0.0
  %271 = vmatpush1.msra.mxu0 0.0
  %272 = vmatprep.subr.mxu0 0.0
  %273 = vmatpush1.msra.mxu0 0.0
  %274 = vmatprep.subr.mxu0 0.0
  %275 = vmatpush1.msra.mxu0 0.0
  %276 = vmatprep.subr.mxu0 0.0
  %277 = vmatpush1.msra.mxu0 0.0
  %278 = vmatprep.subr.mxu0 0.0
  %279 = vmatpush1.msra.mxu0 0.0
  %280 = vmatprep.subr.mxu0 0.0
  %281 = vmatpush1.msra.mxu0 0.0
  %282 = vmatprep.subr.mxu0 0.0
  %283 = vmatpush1.msra.mxu0 0.0
  %284 = vmatprep.subr.mxu0 0.0
  %285 = vmatpush1.msra.mxu0 0.0
  %286 = vmatprep.subr.mxu0 0.0
  %287 = vmatpush1.msra.mxu0 0.0
  %288 = vmatprep.subr.mxu0 0.0
  %289 = vmatpush1.msra.mxu0 0.0
  %290 = vmatprep.subr.mxu0 0.0
  %291 = vmatpush1.msra.mxu0 0.0
  %292 = vmatprep.subr.mxu0 0.0
  %293 = vmatpush1.msra.mxu0 0.0
  %294 = vmatprep.subr.mxu0 0.0
  %295 = vmatpush1.msra.mxu0 0.0
  %296 = vmatprep.subr.mxu0 0.0
  %297 = vmatpush1.msra.mxu0 0.0
  %298 = vmatprep.subr.mxu0 0.0
  %299 = vmatpush1.msra.mxu0 0.0
  %300 = vmatprep.subr.mxu0 0.0
  %301 = vmatpush1.msra.mxu0 0.0
  %302 = vmatprep.subr.mxu0 0.0
  %303 = vmatpush1.msra.mxu0 0.0
  %304 = vmatprep.subr.mxu0 0.0
  %305 = vmatpush1.msra.mxu0 0.0
  %306 = vmatprep.subr.mxu0 0.0
  %307 = vmatpush1.msra.mxu0 0.0
  %308 = vmatprep.subr.mxu0 0.0
  %309 = vmatpush1.msra.mxu0 0.0
  %310 = vmatprep.subr.mxu0 0.0
  %311 = vmatpush1.msra.mxu0 0.0
  %312 = vmatprep.subr.mxu0 0.0
  %313 = vmatpush1.msra.mxu0 0.0
  %314 = vmatprep.subr.mxu0 0.0
  %315 = vmatpush1.msra.mxu0 0.0
  %316 = vmatprep.subr.mxu0 0.0
  %317 = vmatpush1.msra.mxu0 0.0
  %318 = vmatprep.mubr.f32.mxu0 0.0
  %319 = vmatmul.mubr.f32.gmra.mrb[0].mxu0 %v252
  %v320 = vpop.f32.mrb[0].mxu0
  %v321 = vadd.f32 0.0, %v320
  %v322 = vpop.f32.mrb[0].mxu0
  %v323 = vadd.f32 0.0, %v322
  %324 = vdwg.mxu0
  %v327 = vrot.slane %v321, 6
  %v328 = vrot.slane %v323, 6
  %v331 = vadd.f32 %v127, %v327
  %v332 = vadd.f32 %v129, %v328
  %v333 = vtanh.pop %v331
  %v334 = vtanh.pop %v332
  %v335 = vmul.f32 %v333, 0.5
  %v336 = vmul.f32 %v334, 0.5
  %v337 = vadd.f32 %v335, 0.5
  %v338 = vadd.f32 %v336, 0.5
  %v340 = vrot.slane %v241, 6
  %v342 = vmul.f32 %v337, %v340
  %v343 = vmul.f32 %v337, %v334
  %345 = vrot.lane.b32.xlu0 %v343, 64
  %v346 = vpop.permute.xlu0 %345
  %v348 = vadd.f32 %v342, %v346
  %v349 = vtanh.pop %v348
  %v350 = vmul.f32 %v338, %v349
  %352 = vrot.lane.b32.xlu0 %v350, 64
  %v353 = vpop.permute.xlu0 %352
  %vm355 = vcmask 257026
  %356 = vst.msk [vmem:[#allocation2] sm:$0xc] %vm355, %v353
  %vm357 = vcmask 519426
  %358 = vst.msk [vmem:[#allocation2 + $0xa] sm:$0xc] %vm357, %v353
  %v359 = vrot.slane %v350, 2
  %360 = vrot.lane.b32.xlu0 %v359, 64
  %v361 = vpop.permute.xlu0 %360
  %v362 = vsel %vm53, %v361, 0
  %364 = vmatprep.subr.mxu0 %v138
  %365 = vmatpush1.msra.mxu0 %v137
  %366 = vmatprep.subr.mxu0 %v140
  %367 = vmatpush1.msra.mxu0 %v139
  %368 = vmatprep.subr.mxu0 %v142
  %369 = vmatpush1.msra.mxu0 %v141
  %370 = vmatprep.subr.mxu0 %v144
  %371 = vmatpush1.msra.mxu0 %v143
  %372 = vmatprep.subr.mxu0 %v146
  %373 = vmatpush1.msra.mxu0 %v145
  %374 = vmatprep.subr.mxu0 %v148
  %375 = vmatpush1.msra.mxu0 %v147
  %376 = vmatprep.subr.mxu0 %v150
  %377 = vmatpush1.msra.mxu0 %v149
  %378 = vmatprep.subr.mxu0 %v152
  %379 = vmatpush1.msra.mxu0 %v151
  %380 = vmatprep.subr.mxu0 0.0
  %381 = vmatpush1.msra.mxu0 0.0
  %382 = vmatprep.subr.mxu0 0.0
  %383 = vmatpush1.msra.mxu0 0.0
  %384 = vmatprep.subr.mxu0 0.0
  %385 = vmatpush1.msra.mxu0 0.0
  %386 = vmatprep.subr.mxu0 0.0
  %387 = vmatpush1.msra.mxu0 0.0
  %388 = vmatprep.subr.mxu0 0.0
  %389 = vmatpush1.msra.mxu0 0.0
  %390 = vmatprep.subr.mxu0 0.0
  %391 = vmatpush1.msra.mxu0 0.0
  %392 = vmatprep.subr.mxu0 0.0
  %393 = vmatpush1.msra.mxu0 0.0
  %394 = vmatprep.subr.mxu0 0.0
  %395 = vmatpush1.msra.mxu0 0.0
  %396 = vmatprep.subr.mxu0 0.0
  %397 = vmatpush1.msra.mxu0 0.0
  %398 = vmatprep.subr.mxu0 0.0
  %399 = vmatpush1.msra.mxu0 0.0
  %400 = vmatprep.subr.mxu0 0.0
  %401 = vmatpush1.msra.mxu0 0.0
  %402 = vmatprep.subr.mxu0 0.0
  %403 = vmatpush1.msra.mxu0 0.0
  %404 = vmatprep.subr.mxu0 0.0
  %405 = vmatpush1.msra.mxu0 0.0
  %406 = vmatprep.subr.mxu0 0.0
  %407 = vmatpush1.msra.mxu0 0.0
  %408 = vmatprep.subr.mxu0 0.0
  %409 = vmatpush1.msra.mxu0 0.0
  %410 = vmatprep.subr.mxu0 0.0
  %411 = vmatpush1.msra.mxu0 0.0
  %412 = vmatprep.subr.mxu0 0.0
  %413 = vmatpush1.msra.mxu0 0.0
  %414 = vmatprep.subr.mxu0 0.0
  %415 = vmatpush1.msra.mxu0 0.0
  %416 = vmatprep.subr.mxu0 0.0
  %417 = vmatpush1.msra.mxu0 0.0
  %418 = vmatprep.subr.mxu0 0.0
  %419 = vmatpush1.msra.mxu0 0.0
  %420 = vmatprep.subr.mxu0 0.0
  %421 = vmatpush1.msra.mxu0 0.0
  %422 = vmatprep.subr.mxu0 0.0
  %423 = vmatpush1.msra.mxu0 0.0
  %424 = vmatprep.subr.mxu0 0.0
  %425 = vmatpush1.msra.mxu0 0.0
  %426 = vmatprep.subr.mxu0 0.0
  %427 = vmatpush1.msra.mxu0 0.0
  %428 = vmatprep.mubr.f32.mxu0 0.0
  %429 = vmatmul.mubr.f32.gmra.mrb[0].mxu0 %v362
  %v430 = vpop.f32.mrb[0].mxu0
  %v431 = vadd.f32 0.0, %v430
  %v432 = vpop.f32.mrb[0].mxu0
  %v433 = vadd.f32 0.0, %v432
  %434 = vdwg.mxu0
  %v437 = vrot.slane %v431, 4
  %v438 = vrot.slane %v433, 4
  %v441 = vadd.f32 %v127, %v437
  %v442 = vadd.f32 %v129, %v438
  %v443 = vtanh.pop %v441
  %v444 = vtanh.pop %v442
  %v445 = vmul.f32 %v443, 0.5
  %v446 = vmul.f32 %v444, 0.5
  %v447 = vadd.f32 %v445, 0.5
  %v448 = vadd.f32 %v446, 0.5
  %v450 = vrot.slane %v348, 6
  %v452 = vmul.f32 %v447, %v450
  %v453 = vmul.f32 %v447, %v444
  %455 = vrot.lane.b32.xlu0 %v453, 64
  %v456 = vpop.permute.xlu0 %455
  %v458 = vadd.f32 %v452, %v456
  %v459 = vtanh.pop %v458
  %v460 = vmul.f32 %v448, %v459
  %462 = vrot.lane.b32.xlu0 %v460, 64
  %v463 = vpop.permute.xlu0 %462
  %vm465 = vcmask 259076
  %466 = vst.msk [vmem:[#allocation2] sm:$0x30] %vm465, %v463
  %vm467 = vcmask 521476
  %468 = vst.msk [vmem:[#allocation2 + $0x6] sm:$0x30] %vm467, %v463
  %v469 = vrot.slane %v460, 4
  %470 = vrot.lane.b32.xlu0 %v469, 64
  %v471 = vpop.permute.xlu0 %470
  %v472 = vsel %vm53, %v471, 0
  %474 = vmatprep.subr.mxu0 %v138
  %475 = vmatpush1.msra.mxu0 %v137
  %476 = vmatprep.subr.mxu0 %v140
  %477 = vmatpush1.msra.mxu0 %v139
  %478 = vmatprep.subr.mxu0 %v142
  %479 = vmatpush1.msra.mxu0 %v141
  %480 = vmatprep.subr.mxu0 %v144
  %481 = vmatpush1.msra.mxu0 %v143
  %482 = vmatprep.subr.mxu0 %v146
  %483 = vmatpush1.msra.mxu0 %v145
  %484 = vmatprep.subr.mxu0 %v148
  %485 = vmatpush1.msra.mxu0 %v147
  %486 = vmatprep.subr.mxu0 %v150
  %487 = vmatpush1.msra.mxu0 %v149
  %488 = vmatprep.subr.mxu0 %v152
  %489 = vmatpush1.msra.mxu0 %v151
  %490 = vmatprep.subr.mxu0 0.0
  %491 = vmatpush1.msra.mxu0 0.0
  %492 = vmatprep.subr.mxu0 0.0
  %493 = vmatpush1.msra.mxu0 0.0
  %494 = vmatprep.subr.mxu0 0.0
  %495 = vmatpush1.msra.mxu0 0.0
  %496 = vmatprep.subr.mxu0 0.0
  %497 = vmatpush1.msra.mxu0 0.0
  %498 = vmatprep.subr.mxu0 0.0
  %499 = vmatpush1.msra.mxu0 0.0
  %500 = vmatprep.subr.mxu0 0.0
  %501 = vmatpush1.msra.mxu0 0.0
  %502 = vmatprep.subr.mxu0 0.0
  %503 = vmatpush1.msra.mxu0 0.0
  %504 = vmatprep.subr.mxu0 0.0
  %505 = vmatpush1.msra.mxu0 0.0
  %506 = vmatprep.subr.mxu0 0.0
  %507 = vmatpush1.msra.mxu0 0.0
  %508 = vmatprep.subr.mxu0 0.0
  %509 = vmatpush1.msra.mxu0 0.0
  %510 = vmatprep.subr.mxu0 0.0
  %511 = vmatpush1.msra.mxu0 0.0
  %512 = vmatprep.subr.mxu0 0.0
  %513 = vmatpush1.msra.mxu0 0.0
  %514 = vmatprep.subr.mxu0 0.0
  %515 = vmatpush1.msra.mxu0 0.0
  %516 = vmatprep.subr.mxu0 0.0
  %517 = vmatpush1.msra.mxu0 0.0
  %518 = vmatprep.subr.mxu0 0.0
  %519 = vmatpush1.msra.mxu0 0.0
  %520 = vmatprep.subr.mxu0 0.0
  %521 = vmatpush1.msra.mxu0 0.0
  %522 = vmatprep.subr.mxu0 0.0
  %523 = vmatpush1.msra.mxu0 0.0
  %524 = vmatprep.subr.mxu0 0.0
  %525 = vmatpush1.msra.mxu0 0.0
  %526 = vmatprep.subr.mxu0 0.0
  %527 = vmatpush1.msra.mxu0 0.0
  %528 = vmatprep.subr.mxu0 0.0
  %529 = vmatpush1.msra.mxu0 0.0
  %530 = vmatprep.subr.mxu0 0.0
  %531 = vmatpush1.msra.mxu0 0.0
  %532 = vmatprep.subr.mxu0 0.0
  %533 = vmatpush1.msra.mxu0 0.0
  %534 = vmatprep.subr.mxu0 0.0
  %535 = vmatpush1.msra.mxu0 0.0
  %536 = vmatprep.subr.mxu0 0.0
  %537 = vmatpush1.msra.mxu0 0.0
  %538 = vmatprep.mubr.f32.mxu0 0.0
  %539 = vmatmul.mubr.f32.gmra.mrb[0].mxu0 %v472
  %v540 = vpop.f32.mrb[0].mxu0
  %v541 = vadd.f32 0.0, %v540
  %v542 = vpop.f32.mrb[0].mxu0
  %v543 = vadd.f32 0.0, %v542
  %544 = vdwg.mxu0
  %v547 = vrot.slane %v541, 2
  %v548 = vrot.slane %v543, 2
  %v551 = vadd.f32 %v127, %v547
  %v552 = vadd.f32 %v129, %v548
  %v553 = vtanh.pop %v551
  %v554 = vtanh.pop %v552
  %v555 = vmul.f32 %v553, 0.5
  %v556 = vmul.f32 %v554, 0.5
  %v557 = vadd.f32 %v555, 0.5
  %v558 = vadd.f32 %v556, 0.5
  %v560 = vrot.slane %v458, 6
  %v562 = vmul.f32 %v557, %v560
  %v563 = vmul.f32 %v557, %v554
  %565 = vrot.lane.b32.xlu0 %v563, 64
  %v566 = vpop.permute.xlu0 %565
  %v568 = vadd.f32 %v562, %v566
  %v569 = vtanh.pop %v568
  %v570 = vmul.f32 %v558, %v569
  %572 = vrot.lane.b32.xlu0 %v570, 64
  %v573 = vpop.permute.xlu0 %572
  %vm575 = vcmask 261126
  %576 = vst.msk [vmem:[#allocation2] sm:$0xc0] %vm575, %v573
  %vm577 = vcmask 523526
  %578 = vst.msk [vmem:[#allocation2 + $0x2] sm:$0xc0] %vm577, %v573
  %v579 = vrot.slane %v570, 6
  %580 = vrot.lane.b32.xlu0 %v579, 64
  %v581 = vpop.permute.xlu0 %580
  %v582 = vsel %vm53, %v581, 0
  %584 = vmatprep.subr.mxu0 %v138
  %585 = vmatpush1.msra.mxu0 %v137
  %586 = vmatprep.subr.mxu0 %v140
  %587 = vmatpush1.msra.mxu0 %v139
  %588 = vmatprep.subr.mxu0 %v142
  %589 = vmatpush1.msra.mxu0 %v141
  %590 = vmatprep.subr.mxu0 %v144
  %591 = vmatpush1.msra.mxu0 %v143
  %592 = vmatprep.subr.mxu0 %v146
  %593 = vmatpush1.msra.mxu0 %v145
  %594 = vmatprep.subr.mxu0 %v148
  %595 = vmatpush1.msra.mxu0 %v147
  %596 = vmatprep.subr.mxu0 %v150
  %597 = vmatpush1.msra.mxu0 %v149
  %598 = vmatprep.subr.mxu0 %v152
  %599 = vmatpush1.msra.mxu0 %v151
  %600 = vmatprep.subr.mxu0 0.0
  %601 = vmatpush1.msra.mxu0 0.0
  %602 = vmatprep.subr.mxu0 0.0
  %603 = vmatpush1.msra.mxu0 0.0
  %604 = vmatprep.subr.mxu0 0.0
  %605 = vmatpush1.msra.mxu0 0.0
  %606 = vmatprep.subr.mxu0 0.0
  %607 = vmatpush1.msra.mxu0 0.0
  %608 = vmatprep.subr.mxu0 0.0
  %609 = vmatpush1.msra.mxu0 0.0
  %610 = vmatprep.subr.mxu0 0.0
  %611 = vmatpush1.msra.mxu0 0.0
  %612 = vmatprep.subr.mxu0 0.0
  %613 = vmatpush1.msra.mxu0 0.0
  %614 = vmatprep.subr.mxu0 0.0
  %615 = vmatpush1.msra.mxu0 0.0
  %616 = vmatprep.subr.mxu0 0.0
  %617 = vmatpush1.msra.mxu0 0.0
  %618 = vmatprep.subr.mxu0 0.0
  %619 = vmatpush1.msra.mxu0 0.0
  %620 = vmatprep.subr.mxu0 0.0
  %621 = vmatpush1.msra.mxu0 0.0
  %622 = vmatprep.subr.mxu0 0.0
  %623 = vmatpush1.msra.mxu0 0.0
  %624 = vmatprep.subr.mxu0 0.0
  %625 = vmatpush1.msra.mxu0 0.0
  %626 = vmatprep.subr.mxu0 0.0
  %627 = vmatpush1.msra.mxu0 0.0
  %628 = vmatprep.subr.mxu0 0.0
  %629 = vmatpush1.msra.mxu0 0.0
  %630 = vmatprep.subr.mxu0 0.0
  %631 = vmatpush1.msra.mxu0 0.0
  %632 = vmatprep.subr.mxu0 0.0
  %633 = vmatpush1.msra.mxu0 0.0
  %634 = vmatprep.subr.mxu0 0.0
  %635 = vmatpush1.msra.mxu0 0.0
  %636 = vmatprep.subr.mxu0 0.0
  %637 = vmatpush1.msra.mxu0 0.0
  %638 = vmatprep.subr.mxu0 0.0
  %639 = vmatpush1.msra.mxu0 0.0
  %640 = vmatprep.subr.mxu0 0.0
  %641 = vmatpush1.msra.mxu0 0.0
  %642 = vmatprep.subr.mxu0 0.0
  %643 = vmatpush1.msra.mxu0 0.0
  %644 = vmatprep.subr.mxu0 0.0
  %645 = vmatpush1.msra.mxu0 0.0
  %646 = vmatprep.subr.mxu0 0.0
  %647 = vmatpush1.msra.mxu0 0.0
  %648 = vmatprep.mubr.f32.mxu0 0.0
  %649 = vmatmul.mubr.f32.gmra.mrb[0].mxu0 %v582
  %v650 = vpop.f32.mrb[0].mxu0
  %v651 = vadd.f32 0.0, %v650
  %v652 = vpop.f32.mrb[0].mxu0
  %v653 = vadd.f32 0.0, %v652
  %654 = vdwg.mxu0
  %v655 = vadd.f32 %v133, %v651
  %v656 = vadd.f32 %v135, %v653
  %v657 = vtanh.pop %v655
  %v658 = vtanh.pop %v656
  %v659 = vmul.f32 %v657, 0.5
  %v660 = vmul.f32 %v658, 0.5
  %v661 = vadd.f32 %v659, 0.5
  %v662 = vadd.f32 %v660, 0.5
  %v664 = vrot.slane %v568, 6
  %v666 = vmul.f32 %v661, %v664
  %v667 = vmul.f32 %v661, %v658
  %669 = vrot.lane.b32.xlu0 %v667, 64
  %v670 = vpop.permute.xlu0 %669
  %v672 = vadd.f32 %v666, %v670
  %v673 = vtanh.pop %v672
  %v674 = vmul.f32 %v662, %v673
  %676 = vrot.lane.b32.xlu0 %v674, 64
  %v677 = vpop.permute.xlu0 %676
  %679 = vst.msk [vmem:[#allocation2 + $0x8] sm:$0x3] %vm248, %v677
  %680 = vst.msk [vmem:[#allocation2 + $0x6] sm:$0x3] %vm250, %v677
  %v681 = vsel %vm53, %v677, 0
  %683 = vmatprep.subr.mxu0 %v138
  %684 = vmatpush1.msra.mxu0 %v137
  %685 = vmatprep.subr.mxu0 %v140
  %686 = vmatpush1.msra.mxu0 %v139
  %687 = vmatprep.subr.mxu0 %v142
  %688 = vmatpush1.msra.mxu0 %v141
  %689 = vmatprep.subr.mxu0 %v144
  %690 = vmatpush1.msra.mxu0 %v143
  %691 = vmatprep.subr.mxu0 %v146
  %692 = vmatpush1.msra.mxu0 %v145
  %693 = vmatprep.subr.mxu0 %v148
  %694 = vmatpush1.msra.mxu0 %v147
  %695 = vmatprep.subr.mxu0 %v150
  %696 = vmatpush1.msra.mxu0 %v149
  %697 = vmatprep.subr.mxu0 %v152
  %698 = vmatpush1.msra.mxu0 %v151
  %699 = vmatprep.subr.mxu0 0.0
  %700 = vmatpush1.msra.mxu0 0.0
  %701 = vmatprep.subr.mxu0 0.0
  %702 = vmatpush1.msra.mxu0 0.0
  %703 = vmatprep.subr.mxu0 0.0
  %704 = vmatpush1.msra.mxu0 0.0
  %705 = vmatprep.subr.mxu0 0.0
  %706 = vmatpush1.msra.mxu0 0.0
  %707 = vmatprep.subr.mxu0 0.0
  %708 = vmatpush1.msra.mxu0 0.0
  %709 = vmatprep.subr.mxu0 0.0
  %710 = vmatpush1.msra.mxu0 0.0
  %711 = vmatprep.subr.mxu0 0.0
  %712 = vmatpush1.msra.mxu0 0.0
  %713 = vmatprep.subr.mxu0 0.0
  %714 = vmatpush1.msra.mxu0 0.0
  %715 = vmatprep.subr.mxu0 0.0
  %716 = vmatpush1.msra.mxu0 0.0
  %717 = vmatprep.subr.mxu0 0.0
  %718 = vmatpush1.msra.mxu0 0.0
  %719 = vmatprep.subr.mxu0 0.0
  %720 = vmatpush1.msra.mxu0 0.0
  %721 = vmatprep.subr.mxu0 0.0
  %722 = vmatpush1.msra.mxu0 0.0
  %723 = vmatprep.subr.mxu0 0.0
  %724 = vmatpush1.msra.mxu0 0.0
  %725 = vmatprep.subr.mxu0 0.0
  %726 = vmatpush1.msra.mxu0 0.0
  %727 = vmatprep.subr.mxu0 0.0
  %728 = vmatpush1.msra.mxu0 0.0
  %729 = vmatprep.subr.mxu0 0.0
  %730 = vmatpush1.msra.mxu0 0.0
  %731 = vmatprep.subr.mxu0 0.0
  %732 = vmatpush1.msra.mxu0 0.0
  %733 = vmatprep.subr.mxu0 0.0
  %734 = vmatpush1.msra.mxu0 0.0
  %735 = vmatprep.subr.mxu0 0.0
  %736 = vmatpush1.msra.mxu0 0.0
  %737 = vmatprep.subr.mxu0 0.0
  %738 = vmatpush1.msra.mxu0 0.0
  %739 = vmatprep.subr.mxu0 0.0
  %740 = vmatpush1.msra.mxu0 0.0
  %741 = vmatprep.subr.mxu0 0.0
  %742 = vmatpush1.msra.mxu0 0.0
  %743 = vmatprep.subr.mxu0 0.0
  %744 = vmatpush1.msra.mxu0 0.0
  %745 = vmatprep.subr.mxu0 0.0
  %746 = vmatpush1.msra.mxu0 0.0
  %747 = vmatprep.mubr.f32.mxu0 0.0
  %748 = vmatmul.mubr.f32.gmra.mrb[0].mxu0 %v681
  %v749 = vpop.f32.mrb[0].mxu0
  %v750 = vadd.f32 0.0, %v749
  %v751 = vpop.f32.mrb[0].mxu0
  %v752 = vadd.f32 0.0, %v751
  %753 = vdwg.mxu0
  %v756 = vrot.slane %v750, 6
  %v757 = vrot.slane %v752, 6
  %v760 = vadd.f32 %v133, %v756
  %v761 = vadd.f32 %v135, %v757
  %v762 = vtanh.pop %v760
  %v763 = vtanh.pop %v761
  %v764 = vmul.f32 %v762, 0.5
  %v765 = vmul.f32 %v763, 0.5
  %v766 = vadd.f32 %v764, 0.5
  %v767 = vadd.f32 %v765, 0.5
  %v769 = vrot.slane %v672, 6
  %v771 = vmul.f32 %v766, %v769
  %v772 = vmul.f32 %v766, %v763
  %774 = vrot.lane.b32.xlu0 %v772, 64
  %v775 = vpop.permute.xlu0 %774
  %v777 = vadd.f32 %v771, %v775
  %v778 = vtanh.pop %v777
  %v779 = vmul.f32 %v767, %v778
  %781 = vrot.lane.b32.xlu0 %v779, 64
  %v782 = vpop.permute.xlu0 %781
  %784 = vst.msk [vmem:[#allocation2 + $0x8] sm:$0xc] %vm355, %v782
  %785 = vst.msk [vmem:[#allocation2 + $0x2] sm:$0xc] %vm357, %v782
  %v786 = vrot.slane %v779, 2
  %787 = vrot.lane.b32.xlu0 %v786, 64
  %v788 = vpop.permute.xlu0 %787
  %v789 = vsel %vm53, %v788, 0
  %791 = vmatprep.subr.mxu0 %v138
  %792 = vmatpush1.msra.mxu0 %v137
  %793 = vmatprep.subr.mxu0 %v140
  %794 = vmatpush1.msra.mxu0 %v139
  %795 = vmatprep.subr.mxu0 %v142
  %796 = vmatpush1.msra.mxu0 %v141
  %797 = vmatprep.subr.mxu0 %v144
  %798 = vmatpush1.msra.mxu0 %v143
  %799 = vmatprep.subr.mxu0 %v146
  %800 = vmatpush1.msra.mxu0 %v145
  %801 = vmatprep.subr.mxu0 %v148
  %802 = vmatpush1.msra.mxu0 %v147
  %803 = vmatprep.subr.mxu0 %v150
  %804 = vmatpush1.msra.mxu0 %v149
  %805 = vmatprep.subr.mxu0 %v152
  %806 = vmatpush1.msra.mxu0 %v151
  %807 = vmatprep.subr.mxu0 0.0
  %808 = vmatpush1.msra.mxu0 0.0
  %809 = vmatprep.subr.mxu0 0.0
  %810 = vmatpush1.msra.mxu0 0.0
  %811 = vmatprep.subr.mxu0 0.0
  %812 = vmatpush1.msra.mxu0 0.0
  %813 = vmatprep.subr.mxu0 0.0
  %814 = vmatpush1.msra.mxu0 0.0
  %815 = vmatprep.subr.mxu0 0.0
  %816 = vmatpush1.msra.mxu0 0.0
  %817 = vmatprep.subr.mxu0 0.0
  %818 = vmatpush1.msra.mxu0 0.0
  %819 = vmatprep.subr.mxu0 0.0
  %820 = vmatpush1.msra.mxu0 0.0
  %821 = vmatprep.subr.mxu0 0.0
  %822 = vmatpush1.msra.mxu0 0.0
  %823 = vmatprep.subr.mxu0 0.0
  %824 = vmatpush1.msra.mxu0 0.0
  %825 = vmatprep.subr.mxu0 0.0
  %826 = vmatpush1.msra.mxu0 0.0
  %827 = vmatprep.subr.mxu0 0.0
  %828 = vmatpush1.msra.mxu0 0.0
  %829 = vmatprep.subr.mxu0 0.0
  %830 = vmatpush1.msra.mxu0 0.0
  %831 = vmatprep.subr.mxu0 0.0
  %832 = vmatpush1.msra.mxu0 0.0
  %833 = vmatprep.subr.mxu0 0.0
  %834 = vmatpush1.msra.mxu0 0.0
  %835 = vmatprep.subr.mxu0 0.0
  %836 = vmatpush1.msra.mxu0 0.0
  %837 = vmatprep.subr.mxu0 0.0
  %838 = vmatpush1.msra.mxu0 0.0
  %839 = vmatprep.subr.mxu0 0.0
  %840 = vmatpush1.msra.mxu0 0.0
  %841 = vmatprep.subr.mxu0 0.0
  %842 = vmatpush1.msra.mxu0 0.0
  %843 = vmatprep.subr.mxu0 0.0
  %844 = vmatpush1.msra.mxu0 0.0
  %845 = vmatprep.subr.mxu0 0.0
  %846 = vmatpush1.msra.mxu0 0.0
  %847 = vmatprep.subr.mxu0 0.0
  %848 = vmatpush1.msra.mxu0 0.0
  %849 = vmatprep.subr.mxu0 0.0
  %850 = vmatpush1.msra.mxu0 0.0
  %851 = vmatprep.subr.mxu0 0.0
  %852 = vmatpush1.msra.mxu0 0.0
  %853 = vmatprep.subr.mxu0 0.0
  %854 = vmatpush1.msra.mxu0 0.0
  %855 = vmatprep.mubr.f32.mxu0 0.0
  %856 = vmatmul.mubr.f32.gmra.mrb[0].mxu0 %v789
  %v857 = vpop.f32.mrb[0].mxu0
  %v858 = vadd.f32 0.0, %v857
  %v859 = vpop.f32.mrb[0].mxu0
  %v860 = vadd.f32 0.0, %v859
  %861 = vdwg.mxu0
  %v864 = vrot.slane %v858, 4
  %v865 = vrot.slane %v860, 4
  %v868 = vadd.f32 %v133, %v864
  %v869 = vadd.f32 %v135, %v865
  %v870 = vtanh.pop %v868
  %v871 = vtanh.pop %v869
  %v872 = vmul.f32 %v870, 0.5
  %v873 = vmul.f32 %v871, 0.5
  %v874 = vadd.f32 %v872, 0.5
  %v875 = vadd.f32 %v873, 0.5
  %v877 = vrot.slane %v777, 6
  %v879 = vmul.f32 %v874, %v877
  %v880 = vmul.f32 %v874, %v871
  %882 = vrot.lane.b32.xlu0 %v880, 64
  %v883 = vpop.permute.xlu0 %882
  %v885 = vadd.f32 %v879, %v883
  %v886 = vtanh.pop %v885
  %v887 = vmul.f32 %v875, %v886
  %889 = vrot.lane.b32.xlu0 %v887, 64
  %v890 = vpop.permute.xlu0 %889
  %892 = vst.msk [vmem:[#allocation2 + $0x8] sm:$0x30] %vm465, %v890
  %893 = vst.msk [vmem:[#allocation2 - $0x2] sm:$0x30] %vm467, %v890
  %v894 = vrot.slane %v887, 4
  %895 = vrot.lane.b32.xlu0 %v894, 64
  %v896 = vpop.permute.xlu0 %895
  %v897 = vsel %vm53, %v896, 0
  %899 = vmatprep.subr.mxu0 %v138
  %900 = vmatpush1.msra.mxu0 %v137
  %901 = vmatprep.subr.mxu0 %v140
  %902 = vmatpush1.msra.mxu0 %v139
  %903 = vmatprep.subr.mxu0 %v142
  %904 = vmatpush1.msra.mxu0 %v141
  %905 = vmatprep.subr.mxu0 %v144
  %906 = vmatpush1.msra.mxu0 %v143
  %907 = vmatprep.subr.mxu0 %v146
  %908 = vmatpush1.msra.mxu0 %v145
  %909 = vmatprep.subr.mxu0 %v148
  %910 = vmatpush1.msra.mxu0 %v147
  %911 = vmatprep.subr.mxu0 %v150
  %912 = vmatpush1.msra.mxu0 %v149
  %913 = vmatprep.subr.mxu0 %v152
  %914 = vmatpush1.msra.mxu0 %v151
  %915 = vmatprep.subr.mxu0 0.0
  %916 = vmatpush1.msra.mxu0 0.0
  %917 = vmatprep.subr.mxu0 0.0
  %918 = vmatpush1.msra.mxu0 0.0
  %919 = vmatprep.subr.mxu0 0.0
  %920 = vmatpush1.msra.mxu0 0.0
  %921 = vmatprep.subr.mxu0 0.0
  %922 = vmatpush1.msra.mxu0 0.0
  %923 = vmatprep.subr.mxu0 0.0
  %924 = vmatpush1.msra.mxu0 0.0
  %925 = vmatprep.subr.mxu0 0.0
  %926 = vmatpush1.msra.mxu0 0.0
  %927 = vmatprep.subr.mxu0 0.0
  %928 = vmatpush1.msra.mxu0 0.0
  %929 = vmatprep.subr.mxu0 0.0
  %930 = vmatpush1.msra.mxu0 0.0
  %931 = vmatprep.subr.mxu0 0.0
  %932 = vmatpush1.msra.mxu0 0.0
  %933 = vmatprep.subr.mxu0 0.0
  %934 = vmatpush1.msra.mxu0 0.0
  %935 = vmatprep.subr.mxu0 0.0
  %936 = vmatpush1.msra.mxu0 0.0
  %937 = vmatprep.subr.mxu0 0.0
  %938 = vmatpush1.msra.mxu0 0.0
  %939 = vmatprep.subr.mxu0 0.0
  %940 = vmatpush1.msra.mxu0 0.0
  %941 = vmatprep.subr.mxu0 0.0
  %942 = vmatpush1.msra.mxu0 0.0
  %943 = vmatprep.subr.mxu0 0.0
  %944 = vmatpush1.msra.mxu0 0.0
  %945 = vmatprep.subr.mxu0 0.0
  %946 = vmatpush1.msra.mxu0 0.0
  %947 = vmatprep.subr.mxu0 0.0
  %948 = vmatpush1.msra.mxu0 0.0
  %949 = vmatprep.subr.mxu0 0.0
  %950 = vmatpush1.msra.mxu0 0.0
  %951 = vmatprep.subr.mxu0 0.0
  %952 = vmatpush1.msra.mxu0 0.0
  %953 = vmatprep.subr.mxu0 0.0
  %954 = vmatpush1.msra.mxu0 0.0
  %955 = vmatprep.subr.mxu0 0.0
  %956 = vmatpush1.msra.mxu0 0.0
  %957 = vmatprep.subr.mxu0 0.0
  %958 = vmatpush1.msra.mxu0 0.0
  %959 = vmatprep.subr.mxu0 0.0
  %960 = vmatpush1.msra.mxu0 0.0
  %961 = vmatprep.subr.mxu0 0.0
  %962 = vmatpush1.msra.mxu0 0.0
  %963 = vmatprep.mubr.f32.mxu0 0.0
  %964 = vmatmul.mubr.f32.gmra.mrb[0].mxu0 %v897
  %v965 = vpop.f32.mrb[0].mxu0
  %v966 = vadd.f32 0.0, %v965
  %v967 = vpop.f32.mrb[0].mxu0
  %v968 = vadd.f32 0.0, %v967
  %969 = vdwg.mxu0
  %v972 = vrot.slane %v966, 2
  %v973 = vrot.slane %v968, 2
  %v976 = vadd.f32 %v133, %v972
  %v977 = vadd.f32 %v135, %v973
  %v978 = vtanh.pop %v976
  %v979 = vtanh.pop %v977
  %v980 = vmul.f32 %v978, 0.5
  %v981 = vmul.f32 %v979, 0.5
  %v982 = vadd.f32 %v980, 0.5
  %v983 = vadd.f32 %v981, 0.5
  %v985 = vrot.slane %v885, 6
  %v987 = vmul.f32 %v982, %v985
  %v988 = vmul.f32 %v982, %v979
  %990 = vrot.lane.b32.xlu0 %v988, 64
  %v991 = vpop.permute.xlu0 %990
  %v993 = vadd.f32 %v987, %v991
  %v994 = vtanh.pop %v993
  %v995 = vmul.f32 %v983, %v994
  %997 = vrot.lane.b32.xlu0 %v995, 64
  %v998 = vpop.permute.xlu0 %997
  %1000 = vst.msk [vmem:[#allocation2 + $0x8] sm:$0xc0] %vm575, %v998
  %1001 = vst.msk [vmem:[#allocation2 - $0x6] sm:$0xc0] %vm577, %v998
  %v1002 = vld [vmem:[#allocation2] sm:$0xff]
  %v1003 = vld [vmem:[#allocation2 + $0x8] sm:$0xff]
  %v1004 = vld [vmem:[%s4] sm:$0xff]
  %v1005 = vld [vmem:[%s4 + $0x8] sm:$0xff]
  %v1006 = vld [vmem:[%s4 + $0x10] sm:$0xff]
  %v1007 = vld [vmem:[%s4 + $0x18] sm:$0xff]
  %v1008 = vld [vmem:[%s4 + $0x20] sm:$0xff]
  %v1009 = vld [vmem:[%s4 + $0x28] sm:$0xff]
  %v1010 = vld [vmem:[%s4 + $0x30] sm:$0xff]
  %v1011 = vld [vmem:[%s4 + $0x38] sm:$0xff]
  %v1012 = vld [vmem:[%s5] sm:$0x1]
  %v1014 = vlaneseq
  %v1015 = vshrl.u32 %v1014, 7
  %v1016 = vsub.s32 0, %v1015
  %v1017 = vrot.slane %v1012, %v1016
  %v1020 = vsel %vm53, %v1002, 0
  %v1023 = vsel %vm53, %v1003, 0
  %1025 = vmatprep.subr.mxu0 0.0
  %1026 = vmatpush1.msra.mxu0 %v1004
  %1027 = vmatprep.subr.mxu0 0.0
  %1028 = vmatpush1.msra.mxu0 %v1005
  %1029 = vmatprep.subr.mxu0 0.0
  %1030 = vmatpush1.msra.mxu0 %v1006
  %1031 = vmatprep.subr.mxu0 0.0
  %1032 = vmatpush1.msra.mxu0 %v1007
  %1033 = vmatprep.subr.mxu0 0.0
  %1034 = vmatpush1.msra.mxu0 %v1008
  %1035 = vmatprep.subr.mxu0 0.0
  %1036 = vmatpush1.msra.mxu0 %v1009
  %1037 = vmatprep.subr.mxu0 0.0
  %1038 = vmatpush1.msra.mxu0 %v1010
  %1039 = vmatprep.subr.mxu0 0.0
  %1040 = vmatpush1.msra.mxu0 %v1011
  %1041 = vmatprep.subr.mxu0 0.0
  %1042 = vmatpush1.msra.mxu0 0.0
  %1043 = vmatprep.subr.mxu0 0.0
  %1044 = vmatpush1.msra.mxu0 0.0
  %1045 = vmatprep.subr.mxu0 0.0
  %1046 = vmatpush1.msra.mxu0 0.0
  %1047 = vmatprep.subr.mxu0 0.0
  %1048 = vmatpush1.msra.mxu0 0.0
  %1049 = vmatprep.subr.mxu0 0.0
  %1050 = vmatpush1.msra.mxu0 0.0
  %1051 = vmatprep.subr.mxu0 0.0
  %1052 = vmatpush1.msra.mxu0 0.0
  %1053 = vmatprep.subr.mxu0 0.0
  %1054 = vmatpush1.msra.mxu0 0.0
  %1055 = vmatprep.subr.mxu0 0.0
  %1056 = vmatpush1.msra.mxu0 0.0
  %1057 = vmatprep.subr.mxu0 0.0
  %1058 = vmatpush1.msra.mxu0 0.0
  %1059 = vmatprep.subr.mxu0 0.0
  %1060 = vmatpush1.msra.mxu0 0.0
  %1061 = vmatprep.subr.mxu0 0.0
  %1062 = vmatpush1.msra.mxu0 0.0
  %1063 = vmatprep.subr.mxu0 0.0
  %1064 = vmatpush1.msra.mxu0 0.0
  %1065 = vmatprep.subr.mxu0 0.0
  %1066 = vmatpush1.msra.mxu0 0.0
  %1067 = vmatprep.subr.mxu0 0.0
  %1068 = vmatpush1.msra.mxu0 0.0
  %1069 = vmatprep.subr.mxu0 0.0
  %1070 = vmatpush1.msra.mxu0 0.0
  %1071 = vmatprep.subr.mxu0 0.0
  %1072 = vmatpush1.msra.mxu0 0.0
  %1073 = vmatprep.subr.mxu0 0.0
  %1074 = vmatpush1.msra.mxu0 0.0
  %1075 = vmatprep.subr.mxu0 0.0
  %1076 = vmatpush1.msra.mxu0 0.0
  %1077 = vmatprep.subr.mxu0 0.0
  %1078 = vmatpush1.msra.mxu0 0.0
  %1079 = vmatprep.subr.mxu0 0.0
  %1080 = vmatpush1.msra.mxu0 0.0
  %1081 = vmatprep.subr.mxu0 0.0
  %1082 = vmatpush1.msra.mxu0 0.0
  %1083 = vmatprep.subr.mxu0 0.0
  %1084 = vmatpush1.msra.mxu0 0.0
  %1085 = vmatprep.subr.mxu0 0.0
  %1086 = vmatpush1.msra.mxu0 0.0
  %1087 = vmatprep.subr.mxu0 0.0
  %1088 = vmatpush1.msra.mxu0 0.0
  %1089 = vmatprep.mubr.f32.mxu0 0.0
  %1090 = vmatmul.mubr.f32.gmra.mrb[0].mxu0 %v1020
  %v1091 = vpop.f32.mrb[0].mxu0
  %v1092 = vadd.f32 %v1017, %v1091
  %v1093 = vpop.f32.mrb[0].mxu0
  %1094 = vmatprep.mubr.f32.mxu0 0.0
  %1095 = vmatmul.mubr.f32.gmra.mrb[0].mxu0 %v1023
  %v1096 = vpop.f32.mrb[0].mxu0
  %v1097 = vadd.f32 %v1017, %v1096
  %v1098 = vpop.f32.mrb[0].mxu0
  %1099 = vdwg.mxu0
  %vm1100 = vcmask 130048
  %1101 = vst.msk [vmem:[%s6] sm:$0xff] %vm1100, %v1092
  %1102 = vst.msk [vmem:[%s6 + $0x8] sm:$0xff] %vm1100, %v1097
  // Predicated region
  $region26: #{bidirectional_lstm.1} parent=0 // pred_check
    _
  $region27: #{bidirectional_lstm.1} parent=0 // pred_check_branch
    %1104 = sbr.rel (0) target = $region29
  $region28: #{bidirectional_lstm.1} parent=0 // pred_region
    _
  $region29: #{bidirectional_lstm.1} parent=0 // pred_fallthru
    _
  // Predicated region
  $region30: #{bidirectional_lstm.1} parent=0 // pred_check
    _
  $region31: #{bidirectional_lstm.1} parent=0 // pred_check_branch
    %1106 = sbr.rel (0) target = $region33
  $region32: #{bidirectional_lstm.1} parent=0 // pred_region
    _
  $region33: #{bidirectional_lstm.1} parent=0 // pred_fallthru
    _

</llo_original>
